<compile_context>
chip_gen: v7x
topology: tpu7x:2x2x1
jax: 0.10.0
libtpu: 0.0.40
codegen_flags: <defaults>
</compile_context>

<pallas_src>
import math

import jax
import jax.numpy as jnp
from jax import lax
from jax.experimental import pallas as pl
from jax.experimental.pallas import tpu as pltpu

# ---------------- model dims (small, consistent with a BERT-like forward) ----
B = 2          # batch
S = 8          # sequence length
H = 32         # hidden size
F = 4 * H      # FFN intermediate size
VOCAB = 100
TYPE_VOCAB = 2
LN_EPS = 1e-12


def _gelu(x):
    # tanh approximation of GELU (BERT-style), lowers cleanly on TPU (EUP tanh)
    c = math.sqrt(2.0 / math.pi)
    return 0.5 * x * (1.0 + jnp.tanh(c * (x + 0.044715 * x * x * x)))


def _layernorm(x, gamma, beta):
    mu = jnp.mean(x, axis=-1, keepdims=True)
    xc = x - mu
    var = jnp.mean(xc * xc, axis=-1, keepdims=True)
    return xc * lax.rsqrt(var + LN_EPS) * gamma + beta


def _big_model_kernel(tok_ref,        # SMEM (B, S) int32  -- scalar prefetch
                      att_ref,        # VMEM (B, S) f32    (1 = attend, 0 = pad)
                      word_emb_ref,   # VMEM (VOCAB, 1, H)
                      pos_emb_ref,    # VMEM (S, H)
                      wsq_ref,        # VMEM (5, H, H): wq*scale, wk, wv, wo, wp
                      w1_ref,         # VMEM (H, F)
                      w2_ref,         # VMEM (F, H)
                      vec_ref,        # VMEM (6, H): g1, b1, g2, b2, bp, type_emb[0]
                      out_ref):       # VMEM (B, H)
    g1 = vec_ref[0:1, :]
    b1 = vec_ref[1:2, :]
    g2 = vec_ref[2:3, :]
    b2 = vec_ref[3:4, :]
    bp = vec_ref[4:5, :]
    type0 = vec_ref[5:6, :]

    wq = wsq_ref[0]    # scale 1/sqrt(H) pre-folded
    wk = wsq_ref[1]
    wv = wsq_ref[2]
    wo = wsq_ref[3]
    wp = wsq_ref[4]

    pos = pos_emb_ref[...]
    w1 = w1_ref[...]
    w2 = w2_ref[...]

    pooled_rows = []
    for b in range(B):                                   # B = 2, fully unrolled
        # --- embeddings: word (gathered in-kernel) + position + token_type(0) ---
        rows = [word_emb_ref[tok_ref[b, s]] for s in range(S)]        # each (1, H)
        x = jnp.concatenate(rows, axis=0) + pos + type0               # (S, H)
        x0 = x[0:1, :]                                                # (1, H) CLS

        # --- single-head self-attention, CLS query only ---
        k = jnp.dot(x, wk, preferred_element_type=jnp.float32)        # (S, H)
        v = jnp.dot(x, wv, preferred_element_type=jnp.float32)        # (S, H)
        q0 = jnp.dot(x0, wq, preferred_element_type=jnp.float32)      # (1, H)
        scores = lax.dot_general(q0, k, (((1,), (1,)), ((), ())),
                                 preferred_element_type=jnp.float32)  # (1, S)
        scores = scores + (att_ref[b:b + 1, :] - 1.0) * 1e9           # mask bias
        m = jnp.max(scores, axis=-1, keepdims=True)
        e = jnp.exp(scores - m)
        p = e * pl.reciprocal(jnp.sum(e, axis=-1, keepdims=True), approx=True)
        attn0 = jnp.dot(p, v, preferred_element_type=jnp.float32)     # (1, H)
        ao0 = jnp.dot(attn0, wo, preferred_element_type=jnp.float32)  # (1, H)
        h0 = _layernorm(x0 + ao0, g1, b1)                             # (1, H)

        # --- feed-forward + LayerNorm, CLS row only ---
        f0 = jnp.dot(_gelu(jnp.dot(h0, w1, preferred_element_type=jnp.float32)),
                     w2, preferred_element_type=jnp.float32)          # (1, H)
        h2 = _layernorm(h0 + f0, g2, b2)                              # (1, H)

        # --- pooler: dense + tanh on the [CLS] token ---
        pooled_rows.append(
            jnp.tanh(jnp.dot(h2, wp, preferred_element_type=jnp.float32) + bp))

    out_ref[...] = jnp.concatenate(pooled_rows, axis=0)               # (B, H)


def _pallas_big_model(tok, att_f32, params):
    full = lambda shape: pl.BlockSpec(shape, lambda i, tok_ref: (0,) * len(shape))
    return pl.pallas_call(
        _big_model_kernel,
        out_shape=jax.ShapeDtypeStruct((B, H), jnp.float32),
        grid_spec=pltpu.PrefetchScalarGridSpec(
            num_scalar_prefetch=1,               # tok ids -> SMEM
            grid=(1,),                           # single step: whole batch at once
            in_specs=[
                full((B, S)),                    # attention mask (f32)
                full((VOCAB, 1, H)),             # word embeddings
                full((S, H)),                    # position embeddings
                full((5, H, H)),                 # stacked square weights
                full((H, F)),                    # FFN w1
                full((F, H)),                    # FFN w2
                full((6, H)),                    # consolidated small vectors
            ],
            out_specs=pl.BlockSpec((B, H), lambda i, tok_ref: (0, 0)),
        ),
        compiler_params=pltpu.CompilerParams(
            dimension_semantics=("arbitrary",)),
    )(tok, att_f32, params["word_emb"], params["pos_emb"], params["wsq"],
      params["w1"], params["w2"], params["vecs"])


def init_params(key):
    ks = jax.random.split(key, 10)
    scale = 0.02
    word_emb = scale * jax.random.normal(ks[0], (VOCAB, H), jnp.float32)
    pos_emb = scale * jax.random.normal(ks[1], (S, H), jnp.float32)
    type_emb = scale * jax.random.normal(ks[2], (TYPE_VOCAB, H), jnp.float32)
    wq = scale * jax.random.normal(ks[3], (H, H), jnp.float32)
    wk = scale * jax.random.normal(ks[4], (H, H), jnp.float32)
    wv = scale * jax.random.normal(ks[5], (H, H), jnp.float32)
    wo = scale * jax.random.normal(ks[6], (H, H), jnp.float32)
    w1 = scale * jax.random.normal(ks[7], (H, F), jnp.float32)
    w2 = scale * jax.random.normal(ks[8], (F, H), jnp.float32)
    wp = scale * jax.random.normal(ks[9], (H, H), jnp.float32)
    ones = jnp.ones((H,), jnp.float32)
    zeros = jnp.zeros((H,), jnp.float32)
    return {
        # leading "row" axis untiled -> cheap dynamic gather in-kernel
        "word_emb": word_emb.reshape(VOCAB, 1, H),
        "pos_emb": pos_emb,
        # attention scale 1/sqrt(H) folded into Wq at init (one-time transform)
        "wsq": jnp.stack([wq * (1.0 / math.sqrt(H)), wk, wv, wo, wp], axis=0),
        "w1": w1,
        "w2": w2,
        # ln1 gamma/beta, ln2 gamma/beta, pooler bias, token-type-0 embedding
        "vecs": jnp.stack([ones, zeros, ones, zeros, zeros, type_emb[0]], axis=0),
    }


@jax.jit
def big_model_forward(tok, att, params):
    # BigModel.forward: token_type_ids = zeros_like(tok) (type_emb[0] folded into
    # the kernel's `vecs`); main_model(...)['pooler_output']; dropout(eval)=identity.
    att_f32 = att.astype(jnp.float32)
    pooled = _pallas_big_model(tok.astype(jnp.int32), att_f32, params)   # (B, H)
    return pooled                                                        # logits


if __name__ == "__main__":
    key = jax.random.PRNGKey(0)
    k_tok, k_par = jax.random.split(key)
    tok = jax.random.randint(k_tok, (B, S), 0, VOCAB, dtype=jnp.int32)
    # attention mask: second example has last 2 positions padded
    att = jnp.array([[1, 1, 1, 1, 1, 1, 1, 1],
                     [1, 1, 1, 1, 1, 1, 0, 0]], dtype=jnp.int32)
    params = init_params(k_par)

    logits = big_model_forward(tok, att, params)
    jax.block_until_ready(logits)
    assert logits.shape == (B, H) and logits.dtype == jnp.float32
    assert bool(jnp.all(jnp.isfinite(logits)))
    print("KERNEL_OK")
</pallas_src>

<mosaic_0001>
module attributes {stable_mosaic.version = 11 : i64} {
  func.func @_big_model_kernel(%arg0: i32, %arg1: memref<2x8xi32, #tpu.memory_space<smem>>, %arg2: memref<2x8xf32, #tpu.memory_space<vmem>>, %arg3: memref<100x1x32xf32, #tpu.memory_space<vmem>>, %arg4: memref<8x32xf32, #tpu.memory_space<vmem>>, %arg5: memref<5x32x32xf32, #tpu.memory_space<vmem>>, %arg6: memref<32x128xf32, #tpu.memory_space<vmem>>, %arg7: memref<128x32xf32, #tpu.memory_space<vmem>>, %arg8: memref<6x32xf32, #tpu.memory_space<vmem>>, %arg9: memref<2x32xf32, #tpu.memory_space<vmem>>) attributes {dimension_semantics = [#tpu.dimension_semantics<arbitrary>], iteration_bounds = array<i64: 1>, scalar_prefetch = 1 : i64, scratch_operands = 0 : i64, tpu.core_type = #tpu.core_type<tc>, window_params = [{pipeline_mode = #tpu.pipeline_mode<synchronous>, transform_indices = @transform_0, window_bounds = array<i64: 2, 8>}, {pipeline_mode = #tpu.pipeline_mode<synchronous>, transform_indices = @transform_1, window_bounds = array<i64: 100, 1, 32>}, {pipeline_mode = #tpu.pipeline_mode<synchronous>, transform_indices = @transform_2, window_bounds = array<i64: 8, 32>}, {pipeline_mode = #tpu.pipeline_mode<synchronous>, transform_indices = @transform_3, window_bounds = array<i64: 5, 32, 32>}, {pipeline_mode = #tpu.pipeline_mode<synchronous>, transform_indices = @transform_4, window_bounds = array<i64: 32, 128>}, {pipeline_mode = #tpu.pipeline_mode<synchronous>, transform_indices = @transform_5, window_bounds = array<i64: 128, 32>}, {pipeline_mode = #tpu.pipeline_mode<synchronous>, transform_indices = @transform_6, window_bounds = array<i64: 6, 32>}, {pipeline_mode = #tpu.pipeline_mode<synchronous>, transform_indices = @transform_7, window_bounds = array<i64: 2, 32>}]} {
    %c0 = arith.constant 0 : index
    %c0_0 = arith.constant 0 : index
    %0 = vector.load %arg8[%c0, %c0_0] : memref<6x32xf32, #tpu.memory_space<vmem>>, vector<1x32xf32>
    %c1 = arith.constant 1 : index
    %c0_1 = arith.constant 0 : index
    %1 = vector.load %arg8[%c1, %c0_1] : memref<6x32xf32, #tpu.memory_space<vmem>>, vector<1x32xf32>
    %c2 = arith.constant 2 : index
    %c0_2 = arith.constant 0 : index
    %2 = vector.load %arg8[%c2, %c0_2] : memref<6x32xf32, #tpu.memory_space<vmem>>, vector<1x32xf32>
    %c3 = arith.constant 3 : index
    %c0_3 = arith.constant 0 : index
    %3 = vector.load %arg8[%c3, %c0_3] : memref<6x32xf32, #tpu.memory_space<vmem>>, vector<1x32xf32>
    %c4 = arith.constant 4 : index
    %c0_4 = arith.constant 0 : index
    %4 = vector.load %arg8[%c4, %c0_4] : memref<6x32xf32, #tpu.memory_space<vmem>>, vector<1x32xf32>
    %c5 = arith.constant 5 : index
    %c0_5 = arith.constant 0 : index
    %5 = vector.load %arg8[%c5, %c0_5] : memref<6x32xf32, #tpu.memory_space<vmem>>, vector<1x32xf32>
    %c0_6 = arith.constant 0 : index
    %c0_7 = arith.constant 0 : index
    %c0_8 = arith.constant 0 : index
    %6 = vector.load %arg5[%c0_6, %c0_7, %c0_8] : memref<5x32x32xf32, #tpu.memory_space<vmem>>, vector<1x32x32xf32>
    %7 = vector.shape_cast %6 : vector<1x32x32xf32> to vector<32x32xf32>
    %c1_9 = arith.constant 1 : index
    %c0_10 = arith.constant 0 : index
    %c0_11 = arith.constant 0 : index
    %8 = vector.load %arg5[%c1_9, %c0_10, %c0_11] : memref<5x32x32xf32, #tpu.memory_space<vmem>>, vector<1x32x32xf32>
    %9 = vector.shape_cast %8 : vector<1x32x32xf32> to vector<32x32xf32>
    %c2_12 = arith.constant 2 : index
    %c0_13 = arith.constant 0 : index
    %c0_14 = arith.constant 0 : index
    %10 = vector.load %arg5[%c2_12, %c0_13, %c0_14] : memref<5x32x32xf32, #tpu.memory_space<vmem>>, vector<1x32x32xf32>
    %11 = vector.shape_cast %10 : vector<1x32x32xf32> to vector<32x32xf32>
    %c3_15 = arith.constant 3 : index
    %c0_16 = arith.constant 0 : index
    %c0_17 = arith.constant 0 : index
    %12 = vector.load %arg5[%c3_15, %c0_16, %c0_17] : memref<5x32x32xf32, #tpu.memory_space<vmem>>, vector<1x32x32xf32>
    %13 = vector.shape_cast %12 : vector<1x32x32xf32> to vector<32x32xf32>
    %c4_18 = arith.constant 4 : index
    %c0_19 = arith.constant 0 : index
    %c0_20 = arith.constant 0 : index
    %14 = vector.load %arg5[%c4_18, %c0_19, %c0_20] : memref<5x32x32xf32, #tpu.memory_space<vmem>>, vector<1x32x32xf32>
    %15 = vector.shape_cast %14 : vector<1x32x32xf32> to vector<32x32xf32>
    %c0_21 = arith.constant 0 : index
    %c0_22 = arith.constant 0 : index
    %16 = vector.load %arg4[%c0_21, %c0_22] : memref<8x32xf32, #tpu.memory_space<vmem>>, vector<8x32xf32>
    %c0_23 = arith.constant 0 : index
    %c0_24 = arith.constant 0 : index
    %17 = vector.load %arg6[%c0_23, %c0_24] : memref<32x128xf32, #tpu.memory_space<vmem>>, vector<32x128xf32>
    %c0_25 = arith.constant 0 : index
    %c0_26 = arith.constant 0 : index
    %18 = vector.load %arg7[%c0_25, %c0_26] : memref<128x32xf32, #tpu.memory_space<vmem>>, vector<128x32xf32>
    %c0_27 = arith.constant 0 : index
    %c0_28 = arith.constant 0 : index
    %19 = memref.load %arg1[%c0_27, %c0_28] : memref<2x8xi32, #tpu.memory_space<smem>>
    %20 = arith.index_cast %19 : i32 to index
    %c0_29 = arith.constant 0 : index
    %c0_30 = arith.constant 0 : index
    %21 = vector.load %arg3[%20, %c0_29, %c0_30] : memref<100x1x32xf32, #tpu.memory_space<vmem>>, vector<1x1x32xf32>
    %22 = vector.shape_cast %21 : vector<1x1x32xf32> to vector<1x32xf32>
    %c0_31 = arith.constant 0 : index
    %c1_32 = arith.constant 1 : index
    %23 = memref.load %arg1[%c0_31, %c1_32] : memref<2x8xi32, #tpu.memory_space<smem>>
    %24 = arith.index_cast %23 : i32 to index
    %c0_33 = arith.constant 0 : index
    %c0_34 = arith.constant 0 : index
    %25 = vector.load %arg3[%24, %c0_33, %c0_34] : memref<100x1x32xf32, #tpu.memory_space<vmem>>, vector<1x1x32xf32>
    %26 = vector.shape_cast %25 : vector<1x1x32xf32> to vector<1x32xf32>
    %c0_35 = arith.constant 0 : index
    %c2_36 = arith.constant 2 : index
    %27 = memref.load %arg1[%c0_35, %c2_36] : memref<2x8xi32, #tpu.memory_space<smem>>
    %28 = arith.index_cast %27 : i32 to index
    %c0_37 = arith.constant 0 : index
    %c0_38 = arith.constant 0 : index
    %29 = vector.load %arg3[%28, %c0_37, %c0_38] : memref<100x1x32xf32, #tpu.memory_space<vmem>>, vector<1x1x32xf32>
    %30 = vector.shape_cast %29 : vector<1x1x32xf32> to vector<1x32xf32>
    %c0_39 = arith.constant 0 : index
    %c3_40 = arith.constant 3 : index
    %31 = memref.load %arg1[%c0_39, %c3_40] : memref<2x8xi32, #tpu.memory_space<smem>>
    %32 = arith.index_cast %31 : i32 to index
    %c0_41 = arith.constant 0 : index
    %c0_42 = arith.constant 0 : index
    %33 = vector.load %arg3[%32, %c0_41, %c0_42] : memref<100x1x32xf32, #tpu.memory_space<vmem>>, vector<1x1x32xf32>
    %34 = vector.shape_cast %33 : vector<1x1x32xf32> to vector<1x32xf32>
    %c0_43 = arith.constant 0 : index
    %c4_44 = arith.constant 4 : index
    %35 = memref.load %arg1[%c0_43, %c4_44] : memref<2x8xi32, #tpu.memory_space<smem>>
    %36 = arith.index_cast %35 : i32 to index
    %c0_45 = arith.constant 0 : index
    %c0_46 = arith.constant 0 : index
    %37 = vector.load %arg3[%36, %c0_45, %c0_46] : memref<100x1x32xf32, #tpu.memory_space<vmem>>, vector<1x1x32xf32>
    %38 = vector.shape_cast %37 : vector<1x1x32xf32> to vector<1x32xf32>
    %c0_47 = arith.constant 0 : index
    %c5_48 = arith.constant 5 : index
    %39 = memref.load %arg1[%c0_47, %c5_48] : memref<2x8xi32, #tpu.memory_space<smem>>
    %40 = arith.index_cast %39 : i32 to index
    %c0_49 = arith.constant 0 : index
    %c0_50 = arith.constant 0 : index
    %41 = vector.load %arg3[%40, %c0_49, %c0_50] : memref<100x1x32xf32, #tpu.memory_space<vmem>>, vector<1x1x32xf32>
    %42 = vector.shape_cast %41 : vector<1x1x32xf32> to vector<1x32xf32>
    %c0_51 = arith.constant 0 : index
    %c6 = arith.constant 6 : index
    %43 = memref.load %arg1[%c0_51, %c6] : memref<2x8xi32, #tpu.memory_space<smem>>
    %44 = arith.index_cast %43 : i32 to index
    %c0_52 = arith.constant 0 : index
    %c0_53 = arith.constant 0 : index
    %45 = vector.load %arg3[%44, %c0_52, %c0_53] : memref<100x1x32xf32, #tpu.memory_space<vmem>>, vector<1x1x32xf32>
    %46 = vector.shape_cast %45 : vector<1x1x32xf32> to vector<1x32xf32>
    %c0_54 = arith.constant 0 : index
    %c7 = arith.constant 7 : index
    %47 = memref.load %arg1[%c0_54, %c7] : memref<2x8xi32, #tpu.memory_space<smem>>
    %48 = arith.index_cast %47 : i32 to index
    %c0_55 = arith.constant 0 : index
    %c0_56 = arith.constant 0 : index
    %49 = vector.load %arg3[%48, %c0_55, %c0_56] : memref<100x1x32xf32, #tpu.memory_space<vmem>>, vector<1x1x32xf32>
    %50 = vector.shape_cast %49 : vector<1x1x32xf32> to vector<1x32xf32>
    %51 = tpu.concatenate %22, %26, %30, %34, %38, %42, %46, %50 in 0 : vector<1x32xf32>, vector<1x32xf32>, vector<1x32xf32>, vector<1x32xf32>, vector<1x32xf32>, vector<1x32xf32>, vector<1x32xf32>, vector<1x32xf32> -> vector<8x32xf32>
    %52 = arith.addf %51, %16 : vector<8x32xf32>
    %53 = vector.broadcast %5 : vector<1x32xf32> to vector<8x32xf32>
    %54 = arith.addf %52, %53 : vector<8x32xf32>
    %55 = vector.extract_strided_slice %54 {offsets = [0, 0], sizes = [1, 32], strides = [1, 1]} : vector<8x32xf32> to vector<1x32xf32>
    %cst = arith.constant dense<0.000000e+00> : vector<8x32xf32>
    %56 = tpu.matmul %54, %9, %cst {dimension_numbers = #tpu.dot_dimension_numbers<[1], [0], [0], [1], [0, 0, 1, 1], [], []>} : vector<8x32xf32>, vector<32x32xf32>, vector<8x32xf32> -> vector<8x32xf32>
    %cst_57 = arith.constant dense<0.000000e+00> : vector<8x32xf32>
    %57 = tpu.matmul %54, %11, %cst_57 {dimension_numbers = #tpu.dot_dimension_numbers<[1], [0], [0], [1], [0, 0, 1, 1], [], []>} : vector<8x32xf32>, vector<32x32xf32>, vector<8x32xf32> -> vector<8x32xf32>
    %cst_58 = arith.constant dense<0.000000e+00> : vector<1x32xf32>
    %58 = tpu.matmul %55, %7, %cst_58 {dimension_numbers = #tpu.dot_dimension_numbers<[1], [0], [0], [1], [0, 0, 1, 1], [], []>} : vector<1x32xf32>, vector<32x32xf32>, vector<1x32xf32> -> vector<1x32xf32>
    %cst_59 = arith.constant dense<0.000000e+00> : vector<1x8xf32>
    %59 = tpu.matmul %58, %56, %cst_59 {dimension_numbers = #tpu.dot_dimension_numbers<[1], [1], [0], [0], [0, 0, 1, 0], [], []>} : vector<1x32xf32>, vector<8x32xf32>, vector<1x8xf32> -> vector<1x8xf32>
    %c0_60 = arith.constant 0 : index
    %c0_61 = arith.constant 0 : index
    %60 = vector.load %arg2[%c0_60, %c0_61] : memref<2x8xf32, #tpu.memory_space<vmem>>, vector<1x8xf32>
    %cst_62 = arith.constant 1.000000e+00 : f32
    %61 = vector.broadcast %cst_62 : f32 to vector<1x8xf32>
    %62 = arith.subf %60, %61 : vector<1x8xf32>
    %cst_63 = arith.constant 1.000000e+09 : f32
    %63 = vector.broadcast %cst_63 : f32 to vector<1x8xf32>
    %64 = arith.mulf %62, %63 : vector<1x8xf32>
    %65 = arith.addf %59, %64 : vector<1x8xf32>
    %cst_64 = arith.constant dense<0xFF800000> : vector<1xf32>
    %66 = vector.multi_reduction <maximumf>, %65, %cst_64 [1] : vector<1x8xf32> to vector<1xf32>
    %67 = vector.shape_cast %66 : vector<1xf32> to vector<1x1xf32>
    %68 = vector.broadcast %67 : vector<1x1xf32> to vector<1x8xf32>
    %69 = arith.subf %65, %68 : vector<1x8xf32>
    %70 = math.exp %69 : vector<1x8xf32>
    %cst_65 = arith.constant dense<0.000000e+00> : vector<1xf32>
    %71 = vector.multi_reduction <add>, %70, %cst_65 [1] : vector<1x8xf32> to vector<1xf32>
    %72 = vector.shape_cast %71 : vector<1xf32> to vector<1x1xf32>
    %73 = tpu.reciprocal %72 {approx = true} : vector<1x1xf32> -> vector<1x1xf32>
    %74 = vector.broadcast %73 : vector<1x1xf32> to vector<1x8xf32>
    %75 = arith.mulf %70, %74 : vector<1x8xf32>
    %cst_66 = arith.constant dense<0.000000e+00> : vector<1x32xf32>
    %76 = tpu.matmul %75, %57, %cst_66 {dimension_numbers = #tpu.dot_dimension_numbers<[1], [0], [0], [1], [0, 0, 1, 1], [], []>} : vector<1x8xf32>, vector<8x32xf32>, vector<1x32xf32> -> vector<1x32xf32>
    %cst_67 = arith.constant dense<0.000000e+00> : vector<1x32xf32>
    %77 = tpu.matmul %76, %13, %cst_67 {dimension_numbers = #tpu.dot_dimension_numbers<[1], [0], [0], [1], [0, 0, 1, 1], [], []>} : vector<1x32xf32>, vector<32x32xf32>, vector<1x32xf32> -> vector<1x32xf32>
    %78 = arith.addf %55, %77 : vector<1x32xf32>
    %cst_68 = arith.constant dense<0.000000e+00> : vector<1xf32>
    %79 = vector.multi_reduction <add>, %78, %cst_68 [1] : vector<1x32xf32> to vector<1xf32>
    %80 = vector.shape_cast %79 : vector<1xf32> to vector<1x1xf32>
    %cst_69 = arith.constant 3.200000e+01 : f32
    %81 = vector.broadcast %cst_69 : f32 to vector<1x1xf32>
    %82 = arith.divf %80, %81 : vector<1x1xf32>
    %83 = vector.broadcast %82 : vector<1x1xf32> to vector<1x32xf32>
    %84 = arith.subf %78, %83 : vector<1x32xf32>
    %85 = arith.mulf %84, %84 : vector<1x32xf32>
    %cst_70 = arith.constant dense<0.000000e+00> : vector<1xf32>
    %86 = vector.multi_reduction <add>, %85, %cst_70 [1] : vector<1x32xf32> to vector<1xf32>
    %87 = vector.shape_cast %86 : vector<1xf32> to vector<1x1xf32>
    %cst_71 = arith.constant 3.200000e+01 : f32
    %88 = vector.broadcast %cst_71 : f32 to vector<1x1xf32>
    %89 = arith.divf %87, %88 : vector<1x1xf32>
    %cst_72 = arith.constant 9.99999996E-13 : f32
    %90 = vector.broadcast %cst_72 : f32 to vector<1x1xf32>
    %91 = arith.addf %89, %90 : vector<1x1xf32>
    %92 = math.rsqrt %91 : vector<1x1xf32>
    %93 = vector.broadcast %92 : vector<1x1xf32> to vector<1x32xf32>
    %94 = arith.mulf %84, %93 : vector<1x32xf32>
    %95 = arith.mulf %94, %0 : vector<1x32xf32>
    %96 = arith.addf %95, %1 : vector<1x32xf32>
    %cst_73 = arith.constant dense<0.000000e+00> : vector<1x128xf32>
    %97 = tpu.matmul %96, %17, %cst_73 {dimension_numbers = #tpu.dot_dimension_numbers<[1], [0], [0], [1], [0, 0, 1, 1], [], []>} : vector<1x32xf32>, vector<32x128xf32>, vector<1x128xf32> -> vector<1x128xf32>
    %cst_74 = arith.constant 5.000000e-01 : f32
    %98 = vector.broadcast %cst_74 : f32 to vector<1x128xf32>
    %99 = arith.mulf %98, %97 : vector<1x128xf32>
    %cst_75 = arith.constant 4.471500e-02 : f32
    %100 = vector.broadcast %cst_75 : f32 to vector<1x128xf32>
    %101 = arith.mulf %100, %97 : vector<1x128xf32>
    %102 = arith.mulf %101, %97 : vector<1x128xf32>
    %103 = arith.mulf %102, %97 : vector<1x128xf32>
    %104 = arith.addf %97, %103 : vector<1x128xf32>
    %cst_76 = arith.constant 0.797884583 : f32
    %105 = vector.broadcast %cst_76 : f32 to vector<1x128xf32>
    %106 = arith.mulf %105, %104 : vector<1x128xf32>
    %107 = math.tanh %106 : vector<1x128xf32>
    %cst_77 = arith.constant 1.000000e+00 : f32
    %108 = vector.broadcast %cst_77 : f32 to vector<1x128xf32>
    %109 = arith.addf %108, %107 : vector<1x128xf32>
    %110 = arith.mulf %99, %109 : vector<1x128xf32>
    %cst_78 = arith.constant dense<0.000000e+00> : vector<1x32xf32>
    %111 = tpu.matmul %110, %18, %cst_78 {dimension_numbers = #tpu.dot_dimension_numbers<[1], [0], [0], [1], [0, 0, 1, 1], [], []>} : vector<1x128xf32>, vector<128x32xf32>, vector<1x32xf32> -> vector<1x32xf32>
    %112 = arith.addf %96, %111 : vector<1x32xf32>
    %cst_79 = arith.constant dense<0.000000e+00> : vector<1xf32>
    %113 = vector.multi_reduction <add>, %112, %cst_79 [1] : vector<1x32xf32> to vector<1xf32>
    %114 = vector.shape_cast %113 : vector<1xf32> to vector<1x1xf32>
    %cst_80 = arith.constant 3.200000e+01 : f32
    %115 = vector.broadcast %cst_80 : f32 to vector<1x1xf32>
    %116 = arith.divf %114, %115 : vector<1x1xf32>
    %117 = vector.broadcast %116 : vector<1x1xf32> to vector<1x32xf32>
    %118 = arith.subf %112, %117 : vector<1x32xf32>
    %119 = arith.mulf %118, %118 : vector<1x32xf32>
    %cst_81 = arith.constant dense<0.000000e+00> : vector<1xf32>
    %120 = vector.multi_reduction <add>, %119, %cst_81 [1] : vector<1x32xf32> to vector<1xf32>
    %121 = vector.shape_cast %120 : vector<1xf32> to vector<1x1xf32>
    %cst_82 = arith.constant 3.200000e+01 : f32
    %122 = vector.broadcast %cst_82 : f32 to vector<1x1xf32>
    %123 = arith.divf %121, %122 : vector<1x1xf32>
    %cst_83 = arith.constant 9.99999996E-13 : f32
    %124 = vector.broadcast %cst_83 : f32 to vector<1x1xf32>
    %125 = arith.addf %123, %124 : vector<1x1xf32>
    %126 = math.rsqrt %125 : vector<1x1xf32>
    %127 = vector.broadcast %126 : vector<1x1xf32> to vector<1x32xf32>
    %128 = arith.mulf %118, %127 : vector<1x32xf32>
    %129 = arith.mulf %128, %2 : vector<1x32xf32>
    %130 = arith.addf %129, %3 : vector<1x32xf32>
    %cst_84 = arith.constant dense<0.000000e+00> : vector<1x32xf32>
    %131 = tpu.matmul %130, %15, %cst_84 {dimension_numbers = #tpu.dot_dimension_numbers<[1], [0], [0], [1], [0, 0, 1, 1], [], []>} : vector<1x32xf32>, vector<32x32xf32>, vector<1x32xf32> -> vector<1x32xf32>
    %132 = arith.addf %131, %4 : vector<1x32xf32>
    %133 = math.tanh %132 : vector<1x32xf32>
    %c1_85 = arith.constant 1 : index
    %c0_86 = arith.constant 0 : index
    %134 = memref.load %arg1[%c1_85, %c0_86] : memref<2x8xi32, #tpu.memory_space<smem>>
    %135 = arith.index_cast %134 : i32 to index
    %c0_87 = arith.constant 0 : index
    %c0_88 = arith.constant 0 : index
    %136 = vector.load %arg3[%135, %c0_87, %c0_88] : memref<100x1x32xf32, #tpu.memory_space<vmem>>, vector<1x1x32xf32>
    %137 = vector.shape_cast %136 : vector<1x1x32xf32> to vector<1x32xf32>
    %c1_89 = arith.constant 1 : index
    %c1_90 = arith.constant 1 : index
    %138 = memref.load %arg1[%c1_89, %c1_90] : memref<2x8xi32, #tpu.memory_space<smem>>
    %139 = arith.index_cast %138 : i32 to index
    %c0_91 = arith.constant 0 : index
    %c0_92 = arith.constant 0 : index
    %140 = vector.load %arg3[%139, %c0_91, %c0_92] : memref<100x1x32xf32, #tpu.memory_space<vmem>>, vector<1x1x32xf32>
    %141 = vector.shape_cast %140 : vector<1x1x32xf32> to vector<1x32xf32>
    %c1_93 = arith.constant 1 : index
    %c2_94 = arith.constant 2 : index
    %142 = memref.load %arg1[%c1_93, %c2_94] : memref<2x8xi32, #tpu.memory_space<smem>>
    %143 = arith.index_cast %142 : i32 to index
    %c0_95 = arith.constant 0 : index
    %c0_96 = arith.constant 0 : index
    %144 = vector.load %arg3[%143, %c0_95, %c0_96] : memref<100x1x32xf32, #tpu.memory_space<vmem>>, vector<1x1x32xf32>
    %145 = vector.shape_cast %144 : vector<1x1x32xf32> to vector<1x32xf32>
    %c1_97 = arith.constant 1 : index
    %c3_98 = arith.constant 3 : index
    %146 = memref.load %arg1[%c1_97, %c3_98] : memref<2x8xi32, #tpu.memory_space<smem>>
    %147 = arith.index_cast %146 : i32 to index
    %c0_99 = arith.constant 0 : index
    %c0_100 = arith.constant 0 : index
    %148 = vector.load %arg3[%147, %c0_99, %c0_100] : memref<100x1x32xf32, #tpu.memory_space<vmem>>, vector<1x1x32xf32>
    %149 = vector.shape_cast %148 : vector<1x1x32xf32> to vector<1x32xf32>
    %c1_101 = arith.constant 1 : index
    %c4_102 = arith.constant 4 : index
    %150 = memref.load %arg1[%c1_101, %c4_102] : memref<2x8xi32, #tpu.memory_space<smem>>
    %151 = arith.index_cast %150 : i32 to index
    %c0_103 = arith.constant 0 : index
    %c0_104 = arith.constant 0 : index
    %152 = vector.load %arg3[%151, %c0_103, %c0_104] : memref<100x1x32xf32, #tpu.memory_space<vmem>>, vector<1x1x32xf32>
    %153 = vector.shape_cast %152 : vector<1x1x32xf32> to vector<1x32xf32>
    %c1_105 = arith.constant 1 : index
    %c5_106 = arith.constant 5 : index
    %154 = memref.load %arg1[%c1_105, %c5_106] : memref<2x8xi32, #tpu.memory_space<smem>>
    %155 = arith.index_cast %154 : i32 to index
    %c0_107 = arith.constant 0 : index
    %c0_108 = arith.constant 0 : index
    %156 = vector.load %arg3[%155, %c0_107, %c0_108] : memref<100x1x32xf32, #tpu.memory_space<vmem>>, vector<1x1x32xf32>
    %157 = vector.shape_cast %156 : vector<1x1x32xf32> to vector<1x32xf32>
    %c1_109 = arith.constant 1 : index
    %c6_110 = arith.constant 6 : index
    %158 = memref.load %arg1[%c1_109, %c6_110] : memref<2x8xi32, #tpu.memory_space<smem>>
    %159 = arith.index_cast %158 : i32 to index
    %c0_111 = arith.constant 0 : index
    %c0_112 = arith.constant 0 : index
    %160 = vector.load %arg3[%159, %c0_111, %c0_112] : memref<100x1x32xf32, #tpu.memory_space<vmem>>, vector<1x1x32xf32>
    %161 = vector.shape_cast %160 : vector<1x1x32xf32> to vector<1x32xf32>
    %c1_113 = arith.constant 1 : index
    %c7_114 = arith.constant 7 : index
    %162 = memref.load %arg1[%c1_113, %c7_114] : memref<2x8xi32, #tpu.memory_space<smem>>
    %163 = arith.index_cast %162 : i32 to index
    %c0_115 = arith.constant 0 : index
    %c0_116 = arith.constant 0 : index
    %164 = vector.load %arg3[%163, %c0_115, %c0_116] : memref<100x1x32xf32, #tpu.memory_space<vmem>>, vector<1x1x32xf32>
    %165 = vector.shape_cast %164 : vector<1x1x32xf32> to vector<1x32xf32>
    %166 = tpu.concatenate %137, %141, %145, %149, %153, %157, %161, %165 in 0 : vector<1x32xf32>, vector<1x32xf32>, vector<1x32xf32>, vector<1x32xf32>, vector<1x32xf32>, vector<1x32xf32>, vector<1x32xf32>, vector<1x32xf32> -> vector<8x32xf32>
    %167 = arith.addf %166, %16 : vector<8x32xf32>
    %168 = vector.broadcast %5 : vector<1x32xf32> to vector<8x32xf32>
    %169 = arith.addf %167, %168 : vector<8x32xf32>
    %170 = vector.extract_strided_slice %169 {offsets = [0, 0], sizes = [1, 32], strides = [1, 1]} : vector<8x32xf32> to vector<1x32xf32>
    %cst_117 = arith.constant dense<0.000000e+00> : vector<8x32xf32>
    %171 = tpu.matmul %169, %9, %cst_117 {dimension_numbers = #tpu.dot_dimension_numbers<[1], [0], [0], [1], [0, 0, 1, 1], [], []>} : vector<8x32xf32>, vector<32x32xf32>, vector<8x32xf32> -> vector<8x32xf32>
    %cst_118 = arith.constant dense<0.000000e+00> : vector<8x32xf32>
    %172 = tpu.matmul %169, %11, %cst_118 {dimension_numbers = #tpu.dot_dimension_numbers<[1], [0], [0], [1], [0, 0, 1, 1], [], []>} : vector<8x32xf32>, vector<32x32xf32>, vector<8x32xf32> -> vector<8x32xf32>
    %cst_119 = arith.constant dense<0.000000e+00> : vector<1x32xf32>
    %173 = tpu.matmul %170, %7, %cst_119 {dimension_numbers = #tpu.dot_dimension_numbers<[1], [0], [0], [1], [0, 0, 1, 1], [], []>} : vector<1x32xf32>, vector<32x32xf32>, vector<1x32xf32> -> vector<1x32xf32>
    %cst_120 = arith.constant dense<0.000000e+00> : vector<1x8xf32>
    %174 = tpu.matmul %173, %171, %cst_120 {dimension_numbers = #tpu.dot_dimension_numbers<[1], [1], [0], [0], [0, 0, 1, 0], [], []>} : vector<1x32xf32>, vector<8x32xf32>, vector<1x8xf32> -> vector<1x8xf32>
    %c1_121 = arith.constant 1 : index
    %c0_122 = arith.constant 0 : index
    %175 = vector.load %arg2[%c1_121, %c0_122] : memref<2x8xf32, #tpu.memory_space<vmem>>, vector<1x8xf32>
    %cst_123 = arith.constant 1.000000e+00 : f32
    %176 = vector.broadcast %cst_123 : f32 to vector<1x8xf32>
    %177 = arith.subf %175, %176 : vector<1x8xf32>
    %cst_124 = arith.constant 1.000000e+09 : f32
    %178 = vector.broadcast %cst_124 : f32 to vector<1x8xf32>
    %179 = arith.mulf %177, %178 : vector<1x8xf32>
    %180 = arith.addf %174, %179 : vector<1x8xf32>
    %cst_125 = arith.constant dense<0xFF800000> : vector<1xf32>
    %181 = vector.multi_reduction <maximumf>, %180, %cst_125 [1] : vector<1x8xf32> to vector<1xf32>
    %182 = vector.shape_cast %181 : vector<1xf32> to vector<1x1xf32>
    %183 = vector.broadcast %182 : vector<1x1xf32> to vector<1x8xf32>
    %184 = arith.subf %180, %183 : vector<1x8xf32>
    %185 = math.exp %184 : vector<1x8xf32>
    %cst_126 = arith.constant dense<0.000000e+00> : vector<1xf32>
    %186 = vector.multi_reduction <add>, %185, %cst_126 [1] : vector<1x8xf32> to vector<1xf32>
    %187 = vector.shape_cast %186 : vector<1xf32> to vector<1x1xf32>
    %188 = tpu.reciprocal %187 {approx = true} : vector<1x1xf32> -> vector<1x1xf32>
    %189 = vector.broadcast %188 : vector<1x1xf32> to vector<1x8xf32>
    %190 = arith.mulf %185, %189 : vector<1x8xf32>
    %cst_127 = arith.constant dense<0.000000e+00> : vector<1x32xf32>
    %191 = tpu.matmul %190, %172, %cst_127 {dimension_numbers = #tpu.dot_dimension_numbers<[1], [0], [0], [1], [0, 0, 1, 1], [], []>} : vector<1x8xf32>, vector<8x32xf32>, vector<1x32xf32> -> vector<1x32xf32>
    %cst_128 = arith.constant dense<0.000000e+00> : vector<1x32xf32>
    %192 = tpu.matmul %191, %13, %cst_128 {dimension_numbers = #tpu.dot_dimension_numbers<[1], [0], [0], [1], [0, 0, 1, 1], [], []>} : vector<1x32xf32>, vector<32x32xf32>, vector<1x32xf32> -> vector<1x32xf32>
    %193 = arith.addf %170, %192 : vector<1x32xf32>
    %cst_129 = arith.constant dense<0.000000e+00> : vector<1xf32>
    %194 = vector.multi_reduction <add>, %193, %cst_129 [1] : vector<1x32xf32> to vector<1xf32>
    %195 = vector.shape_cast %194 : vector<1xf32> to vector<1x1xf32>
    %cst_130 = arith.constant 3.200000e+01 : f32
    %196 = vector.broadcast %cst_130 : f32 to vector<1x1xf32>
    %197 = arith.divf %195, %196 : vector<1x1xf32>
    %198 = vector.broadcast %197 : vector<1x1xf32> to vector<1x32xf32>
    %199 = arith.subf %193, %198 : vector<1x32xf32>
    %200 = arith.mulf %199, %199 : vector<1x32xf32>
    %cst_131 = arith.constant dense<0.000000e+00> : vector<1xf32>
    %201 = vector.multi_reduction <add>, %200, %cst_131 [1] : vector<1x32xf32> to vector<1xf32>
    %202 = vector.shape_cast %201 : vector<1xf32> to vector<1x1xf32>
    %cst_132 = arith.constant 3.200000e+01 : f32
    %203 = vector.broadcast %cst_132 : f32 to vector<1x1xf32>
    %204 = arith.divf %202, %203 : vector<1x1xf32>
    %cst_133 = arith.constant 9.99999996E-13 : f32
    %205 = vector.broadcast %cst_133 : f32 to vector<1x1xf32>
    %206 = arith.addf %204, %205 : vector<1x1xf32>
    %207 = math.rsqrt %206 : vector<1x1xf32>
    %208 = vector.broadcast %207 : vector<1x1xf32> to vector<1x32xf32>
    %209 = arith.mulf %199, %208 : vector<1x32xf32>
    %210 = arith.mulf %209, %0 : vector<1x32xf32>
    %211 = arith.addf %210, %1 : vector<1x32xf32>
    %cst_134 = arith.constant dense<0.000000e+00> : vector<1x128xf32>
    %212 = tpu.matmul %211, %17, %cst_134 {dimension_numbers = #tpu.dot_dimension_numbers<[1], [0], [0], [1], [0, 0, 1, 1], [], []>} : vector<1x32xf32>, vector<32x128xf32>, vector<1x128xf32> -> vector<1x128xf32>
    %cst_135 = arith.constant 5.000000e-01 : f32
    %213 = vector.broadcast %cst_135 : f32 to vector<1x128xf32>
    %214 = arith.mulf %213, %212 : vector<1x128xf32>
    %cst_136 = arith.constant 4.471500e-02 : f32
    %215 = vector.broadcast %cst_136 : f32 to vector<1x128xf32>
    %216 = arith.mulf %215, %212 : vector<1x128xf32>
    %217 = arith.mulf %216, %212 : vector<1x128xf32>
    %218 = arith.mulf %217, %212 : vector<1x128xf32>
    %219 = arith.addf %212, %218 : vector<1x128xf32>
    %cst_137 = arith.constant 0.797884583 : f32
    %220 = vector.broadcast %cst_137 : f32 to vector<1x128xf32>
    %221 = arith.mulf %220, %219 : vector<1x128xf32>
    %222 = math.tanh %221 : vector<1x128xf32>
    %cst_138 = arith.constant 1.000000e+00 : f32
    %223 = vector.broadcast %cst_138 : f32 to vector<1x128xf32>
    %224 = arith.addf %223, %222 : vector<1x128xf32>
    %225 = arith.mulf %214, %224 : vector<1x128xf32>
    %cst_139 = arith.constant dense<0.000000e+00> : vector<1x32xf32>
    %226 = tpu.matmul %225, %18, %cst_139 {dimension_numbers = #tpu.dot_dimension_numbers<[1], [0], [0], [1], [0, 0, 1, 1], [], []>} : vector<1x128xf32>, vector<128x32xf32>, vector<1x32xf32> -> vector<1x32xf32>
    %227 = arith.addf %211, %226 : vector<1x32xf32>
    %cst_140 = arith.constant dense<0.000000e+00> : vector<1xf32>
    %228 = vector.multi_reduction <add>, %227, %cst_140 [1] : vector<1x32xf32> to vector<1xf32>
    %229 = vector.shape_cast %228 : vector<1xf32> to vector<1x1xf32>
    %cst_141 = arith.constant 3.200000e+01 : f32
    %230 = vector.broadcast %cst_141 : f32 to vector<1x1xf32>
    %231 = arith.divf %229, %230 : vector<1x1xf32>
    %232 = vector.broadcast %231 : vector<1x1xf32> to vector<1x32xf32>
    %233 = arith.subf %227, %232 : vector<1x32xf32>
    %234 = arith.mulf %233, %233 : vector<1x32xf32>
    %cst_142 = arith.constant dense<0.000000e+00> : vector<1xf32>
    %235 = vector.multi_reduction <add>, %234, %cst_142 [1] : vector<1x32xf32> to vector<1xf32>
    %236 = vector.shape_cast %235 : vector<1xf32> to vector<1x1xf32>
    %cst_143 = arith.constant 3.200000e+01 : f32
    %237 = vector.broadcast %cst_143 : f32 to vector<1x1xf32>
    %238 = arith.divf %236, %237 : vector<1x1xf32>
    %cst_144 = arith.constant 9.99999996E-13 : f32
    %239 = vector.broadcast %cst_144 : f32 to vector<1x1xf32>
    %240 = arith.addf %238, %239 : vector<1x1xf32>
    %241 = math.rsqrt %240 : vector<1x1xf32>
    %242 = vector.broadcast %241 : vector<1x1xf32> to vector<1x32xf32>
    %243 = arith.mulf %233, %242 : vector<1x32xf32>
    %244 = arith.mulf %243, %2 : vector<1x32xf32>
    %245 = arith.addf %244, %3 : vector<1x32xf32>
    %cst_145 = arith.constant dense<0.000000e+00> : vector<1x32xf32>
    %246 = tpu.matmul %245, %15, %cst_145 {dimension_numbers = #tpu.dot_dimension_numbers<[1], [0], [0], [1], [0, 0, 1, 1], [], []>} : vector<1x32xf32>, vector<32x32xf32>, vector<1x32xf32> -> vector<1x32xf32>
    %247 = arith.addf %246, %4 : vector<1x32xf32>
    %248 = math.tanh %247 : vector<1x32xf32>
    %249 = tpu.concatenate %133, %248 in 0 : vector<1x32xf32>, vector<1x32xf32> -> vector<2x32xf32>
    %c0_146 = arith.constant 0 : index
    %c0_147 = arith.constant 0 : index
    %250 = vector.load %arg9[%c0_146, %c0_147] : memref<2x32xf32, #tpu.memory_space<vmem>>, vector<2x32xf32>
    tpu.vector_store %arg9[%c0_146, %c0_147], %249 {strides = array<i32>} : memref<2x32xf32, #tpu.memory_space<vmem>>, vector<2x32xf32>,
    return
  }
  func.func @transform_0(%arg0: i32, %arg1: memref<2x8xi32, #tpu.memory_space<smem>>) -> (i32, i32) {
    %c0_i32 = arith.constant 0 : i32
    %c0_i32_0 = arith.constant 0 : i32
    %c0_i32_1 = arith.constant 0 : i32
    return %c0_i32, %c0_i32_0 : i32, i32
  }
  func.func @transform_1(%arg0: i32, %arg1: memref<2x8xi32, #tpu.memory_space<smem>>) -> (i32, i32, i32) {
    %c0_i32 = arith.constant 0 : i32
    %c0_i32_0 = arith.constant 0 : i32
    %c0_i32_1 = arith.constant 0 : i32
    %c0_i32_2 = arith.constant 0 : i32
    return %c0_i32, %c0_i32_0, %c0_i32_1 : i32, i32, i32
  }
  func.func @transform_2(%arg0: i32, %arg1: memref<2x8xi32, #tpu.memory_space<smem>>) -> (i32, i32) {
    %c0_i32 = arith.constant 0 : i32
    %c0_i32_0 = arith.constant 0 : i32
    %c0_i32_1 = arith.constant 0 : i32
    return %c0_i32, %c0_i32_0 : i32, i32
  }
  func.func @transform_3(%arg0: i32, %arg1: memref<2x8xi32, #tpu.memory_space<smem>>) -> (i32, i32, i32) {
    %c0_i32 = arith.constant 0 : i32
    %c0_i32_0 = arith.constant 0 : i32
    %c0_i32_1 = arith.constant 0 : i32
    %c0_i32_2 = arith.constant 0 : i32
    return %c0_i32, %c0_i32_0, %c0_i32_1 : i32, i32, i32
  }
  func.func @transform_4(%arg0: i32, %arg1: memref<2x8xi32, #tpu.memory_space<smem>>) -> (i32, i32) {
    %c0_i32 = arith.constant 0 : i32
    %c0_i32_0 = arith.constant 0 : i32
    %c0_i32_1 = arith.constant 0 : i32
    return %c0_i32, %c0_i32_0 : i32, i32
  }
  func.func @transform_5(%arg0: i32, %arg1: memref<2x8xi32, #tpu.memory_space<smem>>) -> (i32, i32) {
    %c0_i32 = arith.constant 0 : i32
    %c0_i32_0 = arith.constant 0 : i32
    %c0_i32_1 = arith.constant 0 : i32
    return %c0_i32, %c0_i32_0 : i32, i32
  }
  func.func @transform_6(%arg0: i32, %arg1: memref<2x8xi32, #tpu.memory_space<smem>>) -> (i32, i32) {
    %c0_i32 = arith.constant 0 : i32
    %c0_i32_0 = arith.constant 0 : i32
    %c0_i32_1 = arith.constant 0 : i32
    return %c0_i32, %c0_i32_0 : i32, i32
  }
  func.func @transform_7(%arg0: i32, %arg1: memref<2x8xi32, #tpu.memory_space<smem>>) -> (i32, i32) {
    %c0_i32 = arith.constant 0 : i32
    %c0_i32_0 = arith.constant 0 : i32
    %c0_i32_1 = arith.constant 0 : i32
    return %c0_i32, %c0_i32_0 : i32, i32
  }
}

</mosaic_0001>

<llo_original>
// kernel: big_model_forward.1
$region0: #{big_model_forward.1}
  #allocation0 [shape = 'u32[]', space=smem, size = 0x4, offset = 0x4, fixed_abs, tag = 'smem constant byte address 0x4 - core index']
  #allocation1 [shape = 'u32[144,128]{1,0:T(1,128)}', space=vmem, size = 0x12000, scoped, tag = 'internal scratch']
  #allocation2 [shape = 's32[1]{0}', space=sflag, size = 0x4, scoped, tag = 'scoped memory for big_model_forward.1']
  #allocation3 [shape = 'u8[1024]{0}', space=smem, size = 0x400, scoped, tag = 'prefetched SMEM operand 0']
  %s0 = inlined_call_operand.vmem [shape: s32[2,8], index: 0, kind: input, shape index: {}]
  %s1 = inlined_call_operand.vmem [shape: f32[2,8], index: 1, kind: input, shape index: {}]
  %s2 = inlined_call_operand.vmem [shape: f32[100,1,32], index: 2, kind: input, shape index: {}]
  %s3 = inlined_call_operand.vmem [shape: f32[8,32], index: 3, kind: input, shape index: {}]
  %s4 = inlined_call_operand.vmem [shape: f32[5,32,32], index: 4, kind: input, shape index: {}]
  %s5 = inlined_call_operand.vmem [shape: f32[32,128], index: 5, kind: input, shape index: {}]
  %s6 = inlined_call_operand.vmem [shape: f32[128,32], index: 6, kind: input, shape index: {}]
  %s7 = inlined_call_operand.vmem [shape: f32[6,32], index: 7, kind: input, shape index: {}]
  %s8 = inlined_call_operand.hbm [shape: f32[2,32], index: 8, kind: output, shape index: {}]
  %s9 = sld [smem:[#allocation0]]
  $region38: #{big_model_forward.1} parent=0
    _
  %s11 = ssub.s32 1, %s9
  %s12 = scalar_select 0, %s11, %s9
  %s13 = sshll.u32 %s0, 4
  %s14 = int_to_ptr.vmem [resolvable:$true] %s13
  %16 = dma.vmem_to_smem %s14, 32, [#allocation3], [#allocation2]
  %17 = dma.done [#allocation2], 32
  %18 = sfence
  $region1: #{big_model_forward.1} parent=0
    #allocation4 [shape = 'u8[1024]{0}', space=vmem, size = 0x400, scoped, tag = 'output window, operand 0, single buffered']
    #allocation5 [shape = 's32[1]{0}', space=sflag, size = 0x4, scoped, tag = 'scoped memory for big_model_forward.1']
    %19 = vsyncpa [#allocation5], 0
    // Predicated region
    $region2: #{big_model_forward.1} parent=1 // pred_check
      _
    $region3: #{big_model_forward.1} parent=1 // pred_check_branch
      %21 = sbr.rel (0) target = $region5
    $region4: #{big_model_forward.1} parent=1 // pred_region
      _
    $region5: #{big_model_forward.1} parent=1 // pred_fallthru
      _
    // Predicated region
    $region6: #{big_model_forward.1} parent=1 // pred_check
      _
    $region7: #{big_model_forward.1} parent=1 // pred_check_branch
      %23 = sbr.rel (0) target = $region9
    $region8: #{big_model_forward.1} parent=1 // pred_region
      _
    $region9: #{big_model_forward.1} parent=1 // pred_fallthru
      _
    // Predicated region
    $region10: #{big_model_forward.1} parent=1 // pred_check
      _
    $region11: #{big_model_forward.1} parent=1 // pred_check_branch
      %25 = sbr.rel (0) target = $region13
    $region12: #{big_model_forward.1} parent=1 // pred_region
      _
    $region13: #{big_model_forward.1} parent=1 // pred_fallthru
      _
    // Predicated region
    $region14: #{big_model_forward.1} parent=1 // pred_check
      _
    $region15: #{big_model_forward.1} parent=1 // pred_check_branch
      %27 = sbr.rel (0) target = $region17
    $region16: #{big_model_forward.1} parent=1 // pred_region
      _
    $region17: #{big_model_forward.1} parent=1 // pred_fallthru
      _
    // Predicated region
    $region18: #{big_model_forward.1} parent=1 // pred_check
      _
    $region19: #{big_model_forward.1} parent=1 // pred_check_branch
      %29 = sbr.rel (0) target = $region21
    $region20: #{big_model_forward.1} parent=1 // pred_region
      _
    $region21: #{big_model_forward.1} parent=1 // pred_fallthru
      _
    // Predicated region
    $region22: #{big_model_forward.1} parent=1 // pred_check
      _
    $region23: #{big_model_forward.1} parent=1 // pred_check_branch
      %31 = sbr.rel (0) target = $region25
    $region24: #{big_model_forward.1} parent=1 // pred_region
      _
    $region25: #{big_model_forward.1} parent=1 // pred_fallthru
      _
    // Predicated region
    $region26: #{big_model_forward.1} parent=1 // pred_check
      _
    $region27: #{big_model_forward.1} parent=1 // pred_check_branch
      %33 = sbr.rel (0) target = $region29
    $region28: #{big_model_forward.1} parent=1 // pred_region
      _
    $region29: #{big_model_forward.1} parent=1 // pred_fallthru
      _
    %v34 = vld [vmem:[%s7] sm:$0x1]
    %v35 = vld [vmem:[%s7 + $0x1] sm:$0x1]
    %v36 = vld [vmem:[%s7 + $0x2] sm:$0x1]
    %v37 = vld [vmem:[%s7 + $0x3] sm:$0x1]
    %v38 = vld [vmem:[%s7 + $0x4] sm:$0x1]
    %v39 = vld [vmem:[%s7 + $0x5] sm:$0x1]
    %v40 = vld [vmem:[%s4] sm:$0xff]
    %v41 = vld [vmem:[%s4 + $0x8] sm:$0xff]
    %v42 = vld [vmem:[%s4 + $0x10] sm:$0xff]
    %v43 = vld [vmem:[%s4 + $0x18] sm:$0xff]
    %s44 = scalar_lea.vmem %s4, 32
    %v45 = vld [vmem:[%s44] sm:$0xff]
    %v46 = vld [vmem:[%s44 + $0x8] sm:$0xff]
    %v47 = vld [vmem:[%s44 + $0x10] sm:$0xff]
    %v48 = vld [vmem:[%s44 + $0x18] sm:$0xff]
    %s49 = scalar_lea.vmem %s4, 64
    %v50 = vld [vmem:[%s49] sm:$0xff]
    %v51 = vld [vmem:[%s49 + $0x8] sm:$0xff]
    %v52 = vld [vmem:[%s49 + $0x10] sm:$0xff]
    %v53 = vld [vmem:[%s49 + $0x18] sm:$0xff]
    %s54 = scalar_lea.vmem %s4, 96
    %v55 = vld [vmem:[%s54] sm:$0xff]
    %v56 = vld [vmem:[%s54 + $0x8] sm:$0xff]
    %v57 = vld [vmem:[%s54 + $0x10] sm:$0xff]
    %v58 = vld [vmem:[%s54 + $0x18] sm:$0xff]
    %s59 = scalar_lea.vmem %s4, 128
    %v60 = vld [vmem:[%s59] sm:$0xff]
    %v61 = vld [vmem:[%s59 + $0x8] sm:$0xff]
    %v62 = vld [vmem:[%s59 + $0x10] sm:$0xff]
    %v63 = vld [vmem:[%s59 + $0x18] sm:$0xff]
    %v64 = vld [vmem:[%s3] sm:$0xff]
    %v65 = vld [vmem:[%s5] sm:$0xff]
    %v66 = vld [vmem:[%s5 + $0x8] sm:$0xff]
    %v67 = vld [vmem:[%s5 + $0x10] sm:$0xff]
    %v68 = vld [vmem:[%s5 + $0x18] sm:$0xff]
    %v69 = vld [vmem:[%s6] sm:$0xff]
    %v70 = vld [vmem:[%s6 + $0x8] sm:$0xff]
    %v71 = vld [vmem:[%s6 + $0x10] sm:$0xff]
    %v72 = vld [vmem:[%s6 + $0x18] sm:$0xff]
    %v73 = vld [vmem:[%s6 + $0x20] sm:$0xff]
    %v74 = vld [vmem:[%s6 + $0x28] sm:$0xff]
    %v75 = vld [vmem:[%s6 + $0x30] sm:$0xff]
    %v76 = vld [vmem:[%s6 + $0x38] sm:$0xff]
    %v77 = vld [vmem:[%s6 + $0x40] sm:$0xff]
    %v78 = vld [vmem:[%s6 + $0x48] sm:$0xff]
    %v79 = vld [vmem:[%s6 + $0x50] sm:$0xff]
    %v80 = vld [vmem:[%s6 + $0x58] sm:$0xff]
    %v81 = vld [vmem:[%s6 + $0x60] sm:$0xff]
    %v82 = vld [vmem:[%s6 + $0x68] sm:$0xff]
    %v83 = vld [vmem:[%s6 + $0x70] sm:$0xff]
    %v84 = vld [vmem:[%s6 + $0x78] sm:$0xff]
    %s85 = sld [smem:[#allocation3]]
    %s86 = scalar_lea.vmem %s2, %s85
    %v87 = vld [vmem:[%s86] sm:$0x1]
    %s88 = sld [smem:[#allocation3 + $0x1]]
    %s89 = scalar_lea.vmem %s2, %s88
    %v90 = vld [vmem:[%s89] sm:$0x1]
    %s91 = sld [smem:[#allocation3 + $0x2]]
    %s92 = scalar_lea.vmem %s2, %s91
    %v93 = vld [vmem:[%s92] sm:$0x1]
    %s94 = sld [smem:[#allocation3 + $0x3]]
    %s95 = scalar_lea.vmem %s2, %s94
    %v96 = vld [vmem:[%s95] sm:$0x1]
    %s97 = sld [smem:[#allocation3 + $0x4]]
    %s98 = scalar_lea.vmem %s2, %s97
    %v99 = vld [vmem:[%s98] sm:$0x1]
    %s100 = sld [smem:[#allocation3 + $0x5]]
    %s101 = scalar_lea.vmem %s2, %s100
    %v102 = vld [vmem:[%s101] sm:$0x1]
    %s103 = sld [smem:[#allocation3 + $0x6]]
    %s104 = scalar_lea.vmem %s2, %s103
    %v105 = vld [vmem:[%s104] sm:$0x1]
    %s106 = sld [smem:[#allocation3 + $0x7]]
    %s107 = scalar_lea.vmem %s2, %s106
    %v108 = vld [vmem:[%s107] sm:$0x1]
    %v110 = vlaneseq
    %v111 = vshrl.u32 %v110, 7
    %v112 = vsub.s32 0, %v111
    %v113 = vrot.slane %v90, %v112
    %v116 = vlaneseq
    %v117 = vshrl.u32 %v116, 7
    %v118 = vsub.s32 0, %v117
    %v119 = vrot.slane %v93, %v118
    %v122 = vlaneseq
    %v123 = vshrl.u32 %v122, 7
    %v124 = vsub.s32 0, %v123
    %v125 = vrot.slane %v96, %v124
    %v128 = vlaneseq
    %v129 = vshrl.u32 %v128, 7
    %v130 = vsub.s32 0, %v129
    %v131 = vrot.slane %v99, %v130
    %v134 = vlaneseq
    %v135 = vshrl.u32 %v134, 7
    %v136 = vsub.s32 0, %v135
    %v137 = vrot.slane %v102, %v136
    %v140 = vlaneseq
    %v141 = vshrl.u32 %v140, 7
    %v142 = vsub.s32 0, %v141
    %v143 = vrot.slane %v105, %v142
    %v146 = vlaneseq
    %v147 = vshrl.u32 %v146, 7
    %v148 = vsub.s32 0, %v147
    %v149 = vrot.slane %v108, %v148
    %vm151 = vcmask 1040384
    %v152 = vsel %vm151, %v87, %v113
    %vm153 = vcmask 1041408
    %v154 = vsel %vm153, %v152, %v119
    %vm155 = vcmask 1042432
    %v156 = vsel %vm155, %v154, %v125
    %vm157 = vcmask 1043456
    %v158 = vsel %vm157, %v156, %v131
    %vm159 = vcmask 1044480
    %v160 = vsel %vm159, %v158, %v137
    %vm161 = vcmask 1045504
    %v162 = vsel %vm161, %v160, %v143
    %vm163 = vcmask 1046528
    %v164 = vsel %vm163, %v162, %v149
    %v165 = vadd.f32 %v164, %v64
    %v166 = vlaneseq
    %v167 = vshrl.u32 %v166, 7
    %v168 = vsub.s32 0, %v167
    %v169 = vrot.slane %v39, %v168
    %v170 = vadd.f32 %v165, %v169
    %vm171 = vcmask 261120
    %v173 = vsel %vm171, %v170, 0
    %175 = vmatprep.subr.mxu0 0.0
    %176 = vmatpush1.msra.mxu0 %v45
    %177 = vmatprep.subr.mxu0 0.0
    %178 = vmatpush1.msra.mxu0 %v46
    %179 = vmatprep.subr.mxu0 0.0
    %180 = vmatpush1.msra.mxu0 %v47
    %181 = vmatprep.subr.mxu0 0.0
    %182 = vmatpush1.msra.mxu0 %v48
    %183 = vmatprep.subr.mxu0 0.0
    %184 = vmatpush1.msra.mxu0 0.0
    %185 = vmatprep.subr.mxu0 0.0
    %186 = vmatpush1.msra.mxu0 0.0
    %187 = vmatprep.subr.mxu0 0.0
    %188 = vmatpush1.msra.mxu0 0.0
    %189 = vmatprep.subr.mxu0 0.0
    %190 = vmatpush1.msra.mxu0 0.0
    %191 = vmatprep.subr.mxu0 0.0
    %192 = vmatpush1.msra.mxu0 0.0
    %193 = vmatprep.subr.mxu0 0.0
    %194 = vmatpush1.msra.mxu0 0.0
    %195 = vmatprep.subr.mxu0 0.0
    %196 = vmatpush1.msra.mxu0 0.0
    %197 = vmatprep.subr.mxu0 0.0
    %198 = vmatpush1.msra.mxu0 0.0
    %199 = vmatprep.subr.mxu0 0.0
    %200 = vmatpush1.msra.mxu0 0.0
    %201 = vmatprep.subr.mxu0 0.0
    %202 = vmatpush1.msra.mxu0 0.0
    %203 = vmatprep.subr.mxu0 0.0
    %204 = vmatpush1.msra.mxu0 0.0
    %205 = vmatprep.subr.mxu0 0.0
    %206 = vmatpush1.msra.mxu0 0.0
    %207 = vmatprep.subr.mxu0 0.0
    %208 = vmatpush1.msra.mxu0 0.0
    %209 = vmatprep.subr.mxu0 0.0
    %210 = vmatpush1.msra.mxu0 0.0
    %211 = vmatprep.subr.mxu0 0.0
    %212 = vmatpush1.msra.mxu0 0.0
    %213 = vmatprep.subr.mxu0 0.0
    %214 = vmatpush1.msra.mxu0 0.0
    %215 = vmatprep.subr.mxu0 0.0
    %216 = vmatpush1.msra.mxu0 0.0
    %217 = vmatprep.subr.mxu0 0.0
    %218 = vmatpush1.msra.mxu0 0.0
    %219 = vmatprep.subr.mxu0 0.0
    %220 = vmatpush1.msra.mxu0 0.0
    %221 = vmatprep.subr.mxu0 0.0
    %222 = vmatpush1.msra.mxu0 0.0
    %223 = vmatprep.subr.mxu0 0.0
    %224 = vmatpush1.msra.mxu0 0.0
    %225 = vmatprep.subr.mxu0 0.0
    %226 = vmatpush1.msra.mxu0 0.0
    %227 = vmatprep.subr.mxu0 0.0
    %228 = vmatpush1.msra.mxu0 0.0
    %229 = vmatprep.subr.mxu0 0.0
    %230 = vmatpush1.msra.mxu0 0.0
    %231 = vmatprep.subr.mxu0 0.0
    %232 = vmatpush1.msra.mxu0 0.0
    %233 = vmatprep.subr.mxu0 0.0
    %234 = vmatpush1.msra.mxu0 0.0
    %235 = vmatprep.subr.mxu0 0.0
    %236 = vmatpush1.msra.mxu0 0.0
    %237 = vmatprep.subr.mxu0 0.0
    %238 = vmatpush1.msra.mxu0 0.0
    %239 = vmatprep.mubr.f32.mxu0 0.0
    %240 = vmatmul.mubr.f32.gmra.mrb[0].mxu0 %v173
    %v241 = vpop.f32.mrb[0].mxu0
    %v242 = vadd.f32 0.0, %v241
    %v243 = vpop.f32.mrb[0].mxu0
    %244 = vdwg.mxu0
    %245 = vmatprep.subr.mxu0 0.0
    %246 = vmatpush1.msra.mxu0 %v50
    %247 = vmatprep.subr.mxu0 0.0
    %248 = vmatpush1.msra.mxu0 %v51
    %249 = vmatprep.subr.mxu0 0.0
    %250 = vmatpush1.msra.mxu0 %v52
    %251 = vmatprep.subr.mxu0 0.0
    %252 = vmatpush1.msra.mxu0 %v53
    %253 = vmatprep.subr.mxu0 0.0
    %254 = vmatpush1.msra.mxu0 0.0
    %255 = vmatprep.subr.mxu0 0.0
    %256 = vmatpush1.msra.mxu0 0.0
    %257 = vmatprep.subr.mxu0 0.0
    %258 = vmatpush1.msra.mxu0 0.0
    %259 = vmatprep.subr.mxu0 0.0
    %260 = vmatpush1.msra.mxu0 0.0
    %261 = vmatprep.subr.mxu0 0.0
    %262 = vmatpush1.msra.mxu0 0.0
    %263 = vmatprep.subr.mxu0 0.0
    %264 = vmatpush1.msra.mxu0 0.0
    %265 = vmatprep.subr.mxu0 0.0
    %266 = vmatpush1.msra.mxu0 0.0
    %267 = vmatprep.subr.mxu0 0.0
    %268 = vmatpush1.msra.mxu0 0.0
    %269 = vmatprep.subr.mxu0 0.0
    %270 = vmatpush1.msra.mxu0 0.0
    %271 = vmatprep.subr.mxu0 0.0
    %272 = vmatpush1.msra.mxu0 0.0
    %273 = vmatprep.subr.mxu0 0.0
    %274 = vmatpush1.msra.mxu0 0.0
    %275 = vmatprep.subr.mxu0 0.0
    %276 = vmatpush1.msra.mxu0 0.0
    %277 = vmatprep.subr.mxu0 0.0
    %278 = vmatpush1.msra.mxu0 0.0
    %279 = vmatprep.subr.mxu0 0.0
    %280 = vmatpush1.msra.mxu0 0.0
    %281 = vmatprep.subr.mxu0 0.0
    %282 = vmatpush1.msra.mxu0 0.0
    %283 = vmatprep.subr.mxu0 0.0
    %284 = vmatpush1.msra.mxu0 0.0
    %285 = vmatprep.subr.mxu0 0.0
    %286 = vmatpush1.msra.mxu0 0.0
    %287 = vmatprep.subr.mxu0 0.0
    %288 = vmatpush1.msra.mxu0 0.0
    %289 = vmatprep.subr.mxu0 0.0
    %290 = vmatpush1.msra.mxu0 0.0
    %291 = vmatprep.subr.mxu0 0.0
    %292 = vmatpush1.msra.mxu0 0.0
    %293 = vmatprep.subr.mxu0 0.0
    %294 = vmatpush1.msra.mxu0 0.0
    %295 = vmatprep.subr.mxu0 0.0
    %296 = vmatpush1.msra.mxu0 0.0
    %297 = vmatprep.subr.mxu0 0.0
    %298 = vmatpush1.msra.mxu0 0.0
    %299 = vmatprep.subr.mxu0 0.0
    %300 = vmatpush1.msra.mxu0 0.0
    %301 = vmatprep.subr.mxu0 0.0
    %302 = vmatpush1.msra.mxu0 0.0
    %303 = vmatprep.subr.mxu0 0.0
    %304 = vmatpush1.msra.mxu0 0.0
    %305 = vmatprep.subr.mxu0 0.0
    %306 = vmatpush1.msra.mxu0 0.0
    %307 = vmatprep.subr.mxu0 0.0
    %308 = vmatpush1.msra.mxu0 0.0
    %309 = vmatprep.mubr.f32.mxu0 0.0
    %310 = vmatmul.mubr.f32.gmra.mrb[0].mxu0 %v173
    %v311 = vpop.f32.mrb[0].mxu0
    %v312 = vadd.f32 0.0, %v311
    %v313 = vpop.f32.mrb[0].mxu0
    %314 = vdwg.mxu0
    %315 = vmatprep.subr.mxu0 0.0
    %316 = vmatpush1.msra.mxu0 %v40
    %317 = vmatprep.subr.mxu0 0.0
    %318 = vmatpush1.msra.mxu0 %v41
    %319 = vmatprep.subr.mxu0 0.0
    %320 = vmatpush1.msra.mxu0 %v42
    %321 = vmatprep.subr.mxu0 0.0
    %322 = vmatpush1.msra.mxu0 %v43
    %323 = vmatprep.subr.mxu0 0.0
    %324 = vmatpush1.msra.mxu0 0.0
    %325 = vmatprep.subr.mxu0 0.0
    %326 = vmatpush1.msra.mxu0 0.0
    %327 = vmatprep.subr.mxu0 0.0
    %328 = vmatpush1.msra.mxu0 0.0
    %329 = vmatprep.subr.mxu0 0.0
    %330 = vmatpush1.msra.mxu0 0.0
    %331 = vmatprep.subr.mxu0 0.0
    %332 = vmatpush1.msra.mxu0 0.0
    %333 = vmatprep.subr.mxu0 0.0
    %334 = vmatpush1.msra.mxu0 0.0
    %335 = vmatprep.subr.mxu0 0.0
    %336 = vmatpush1.msra.mxu0 0.0
    %337 = vmatprep.subr.mxu0 0.0
    %338 = vmatpush1.msra.mxu0 0.0
    %339 = vmatprep.subr.mxu0 0.0
    %340 = vmatpush1.msra.mxu0 0.0
    %341 = vmatprep.subr.mxu0 0.0
    %342 = vmatpush1.msra.mxu0 0.0
    %343 = vmatprep.subr.mxu0 0.0
    %344 = vmatpush1.msra.mxu0 0.0
    %345 = vmatprep.subr.mxu0 0.0
    %346 = vmatpush1.msra.mxu0 0.0
    %347 = vmatprep.subr.mxu0 0.0
    %348 = vmatpush1.msra.mxu0 0.0
    %349 = vmatprep.subr.mxu0 0.0
    %350 = vmatpush1.msra.mxu0 0.0
    %351 = vmatprep.subr.mxu0 0.0
    %352 = vmatpush1.msra.mxu0 0.0
    %353 = vmatprep.subr.mxu0 0.0
    %354 = vmatpush1.msra.mxu0 0.0
    %355 = vmatprep.subr.mxu0 0.0
    %356 = vmatpush1.msra.mxu0 0.0
    %357 = vmatprep.subr.mxu0 0.0
    %358 = vmatpush1.msra.mxu0 0.0
    %359 = vmatprep.subr.mxu0 0.0
    %360 = vmatpush1.msra.mxu0 0.0
    %361 = vmatprep.subr.mxu0 0.0
    %362 = vmatpush1.msra.mxu0 0.0
    %363 = vmatprep.subr.mxu0 0.0
    %364 = vmatpush1.msra.mxu0 0.0
    %365 = vmatprep.subr.mxu0 0.0
    %366 = vmatpush1.msra.mxu0 0.0
    %367 = vmatprep.subr.mxu0 0.0
    %368 = vmatpush1.msra.mxu0 0.0
    %369 = vmatprep.subr.mxu0 0.0
    %370 = vmatpush1.msra.mxu0 0.0
    %371 = vmatprep.subr.mxu0 0.0
    %372 = vmatpush1.msra.mxu0 0.0
    %373 = vmatprep.subr.mxu0 0.0
    %374 = vmatpush1.msra.mxu0 0.0
    %375 = vmatprep.subr.mxu0 0.0
    %376 = vmatpush1.msra.mxu0 0.0
    %377 = vmatprep.subr.mxu0 0.0
    %378 = vmatpush1.msra.mxu0 0.0
    %379 = vmatprep.mubr.f32.mxu0 0.0
    %380 = vmatmul.mubr.f32.gmra.mrb[0].mxu0 %v173
    %v381 = vpop.f32.mrb[0].mxu0
    %v382 = vadd.f32 0.0, %v381
    %v383 = vpop.f32.mrb[0].mxu0
    %384 = vdwg.mxu0
    %v385 = vld [vmem:[%s1] sm:$0x1]
    %v386 = vsub.f32 %v385, 1.0
    %v387 = vmul.f32 %v386, 1e+09
    %v389 = vsel %vm171, %v382, 0
    %v392 = vsel %vm171, %v242, 0
    %394 = vmatprep.subr.mxu0 0.0
    %395 = vmatpush1.xpose.msra.mxu0 %v392
    %396 = vmatprep.subr.mxu0 0.0
    %397 = vmatpush1.xpose.msra.mxu0 0.0
    %398 = vmatprep.subr.mxu0 0.0
    %399 = vmatpush1.xpose.msra.mxu0 0.0
    %400 = vmatprep.subr.mxu0 0.0
    %401 = vmatpush1.xpose.msra.mxu0 0.0
    %402 = vmatprep.subr.mxu0 0.0
    %403 = vmatpush1.xpose.msra.mxu0 0.0
    %404 = vmatprep.subr.mxu0 0.0
    %405 = vmatpush1.xpose.msra.mxu0 0.0
    %406 = vmatprep.subr.mxu0 0.0
    %407 = vmatpush1.xpose.msra.mxu0 0.0
    %408 = vmatprep.subr.mxu0 0.0
    %409 = vmatpush1.xpose.msra.mxu0 0.0
    %410 = vmatprep.subr.mxu0 0.0
    %411 = vmatpush1.xpose.msra.mxu0 0.0
    %412 = vmatprep.subr.mxu0 0.0
    %413 = vmatpush1.xpose.msra.mxu0 0.0
    %414 = vmatprep.subr.mxu0 0.0
    %415 = vmatpush1.xpose.msra.mxu0 0.0
    %416 = vmatprep.subr.mxu0 0.0
    %417 = vmatpush1.xpose.msra.mxu0 0.0
    %418 = vmatprep.subr.mxu0 0.0
    %419 = vmatpush1.xpose.msra.mxu0 0.0
    %420 = vmatprep.subr.mxu0 0.0
    %421 = vmatpush1.xpose.msra.mxu0 0.0
    %422 = vmatprep.subr.mxu0 0.0
    %423 = vmatpush1.xpose.msra.mxu0 0.0
    %424 = vmatprep.subr.mxu0 0.0
    %425 = vmatpush1.xpose.msra.mxu0 0.0
    %426 = vmatprep.subr.mxu0 0.0
    %427 = vmatpush1.xpose.msra.mxu0 0.0
    %428 = vmatprep.subr.mxu0 0.0
    %429 = vmatpush1.xpose.msra.mxu0 0.0
    %430 = vmatprep.subr.mxu0 0.0
    %431 = vmatpush1.xpose.msra.mxu0 0.0
    %432 = vmatprep.subr.mxu0 0.0
    %433 = vmatpush1.xpose.msra.mxu0 0.0
    %434 = vmatprep.subr.mxu0 0.0
    %435 = vmatpush1.xpose.msra.mxu0 0.0
    %436 = vmatprep.subr.mxu0 0.0
    %437 = vmatpush1.xpose.msra.mxu0 0.0
    %438 = vmatprep.subr.mxu0 0.0
    %439 = vmatpush1.xpose.msra.mxu0 0.0
    %440 = vmatprep.subr.mxu0 0.0
    %441 = vmatpush1.xpose.msra.mxu0 0.0
    %442 = vmatprep.subr.mxu0 0.0
    %443 = vmatpush1.xpose.msra.mxu0 0.0
    %444 = vmatprep.subr.mxu0 0.0
    %445 = vmatpush1.xpose.msra.mxu0 0.0
    %446 = vmatprep.subr.mxu0 0.0
    %447 = vmatpush1.xpose.msra.mxu0 0.0
    %448 = vmatprep.subr.mxu0 0.0
    %449 = vmatpush1.xpose.msra.mxu0 0.0
    %450 = vmatprep.subr.mxu0 0.0
    %451 = vmatpush1.xpose.msra.mxu0 0.0
    %452 = vmatprep.subr.mxu0 0.0
    %453 = vmatpush1.xpose.msra.mxu0 0.0
    %454 = vmatprep.subr.mxu0 0.0
    %455 = vmatpush1.xpose.msra.mxu0 0.0
    %456 = vmatprep.subr.mxu0 0.0
    %457 = vmatpush1.xpose.msra.mxu0 0.0
    %458 = vmatprep.mubr.f32.mxu0 0.0
    %459 = vmatmul.mubr.f32.gmra.mrb[0].mxu0 %v389
    %v460 = vpop.f32.mrb[0].mxu0
    %v461 = vadd.f32 %v387, %v460
    %v462 = vpop.f32.mrb[0].mxu0
    %463 = vdwg.mxu0
    %vm464 = vcmask 57344
    %v465 = vsel %vm464, %v461, -inf
    %466 = vmax.xlane.f32.xlu0 %v465
    %v467 = vpop.xlane.xlu0 %466
    %v468 = vsub.f32 %v461, %v467
    %v469 = vmul.f32 %v468, 1.442695
    %v470 = vpow.pop %v469
    %v471 = vsel %vm464, %v470, 0.0
    %472 = vadd.xlane.f32.xlu0 %v471
    %v473 = vpop.xlane.xlu0 %472
    %v474 = vrcp.pop %v473
    %v475 = vmul.f32 %v470, %v474
    %vm476 = vcmask 64512
    %v478 = vsel %vm476, %v475, 0
    %480 = vmatprep.subr.mxu0 0.0
    %481 = vmatpush1.msra.mxu0 %v312
    %482 = vmatprep.subr.mxu0 0.0
    %483 = vmatpush1.msra.mxu0 0.0
    %484 = vmatprep.subr.mxu0 0.0
    %485 = vmatpush1.msra.mxu0 0.0
    %486 = vmatprep.subr.mxu0 0.0
    %487 = vmatpush1.msra.mxu0 0.0
    %488 = vmatprep.subr.mxu0 0.0
    %489 = vmatpush1.msra.mxu0 0.0
    %490 = vmatprep.subr.mxu0 0.0
    %491 = vmatpush1.msra.mxu0 0.0
    %492 = vmatprep.subr.mxu0 0.0
    %493 = vmatpush1.msra.mxu0 0.0
    %494 = vmatprep.subr.mxu0 0.0
    %495 = vmatpush1.msra.mxu0 0.0
    %496 = vmatprep.subr.mxu0 0.0
    %497 = vmatpush1.msra.mxu0 0.0
    %498 = vmatprep.subr.mxu0 0.0
    %499 = vmatpush1.msra.mxu0 0.0
    %500 = vmatprep.subr.mxu0 0.0
    %501 = vmatpush1.msra.mxu0 0.0
    %502 = vmatprep.subr.mxu0 0.0
    %503 = vmatpush1.msra.mxu0 0.0
    %504 = vmatprep.subr.mxu0 0.0
    %505 = vmatpush1.msra.mxu0 0.0
    %506 = vmatprep.subr.mxu0 0.0
    %507 = vmatpush1.msra.mxu0 0.0
    %508 = vmatprep.subr.mxu0 0.0
    %509 = vmatpush1.msra.mxu0 0.0
    %510 = vmatprep.subr.mxu0 0.0
    %511 = vmatpush1.msra.mxu0 0.0
    %512 = vmatprep.subr.mxu0 0.0
    %513 = vmatpush1.msra.mxu0 0.0
    %514 = vmatprep.subr.mxu0 0.0
    %515 = vmatpush1.msra.mxu0 0.0
    %516 = vmatprep.subr.mxu0 0.0
    %517 = vmatpush1.msra.mxu0 0.0
    %518 = vmatprep.subr.mxu0 0.0
    %519 = vmatpush1.msra.mxu0 0.0
    %520 = vmatprep.subr.mxu0 0.0
    %521 = vmatpush1.msra.mxu0 0.0
    %522 = vmatprep.subr.mxu0 0.0
    %523 = vmatpush1.msra.mxu0 0.0
    %524 = vmatprep.subr.mxu0 0.0
    %525 = vmatpush1.msra.mxu0 0.0
    %526 = vmatprep.subr.mxu0 0.0
    %527 = vmatpush1.msra.mxu0 0.0
    %528 = vmatprep.subr.mxu0 0.0
    %529 = vmatpush1.msra.mxu0 0.0
    %530 = vmatprep.subr.mxu0 0.0
    %531 = vmatpush1.msra.mxu0 0.0
    %532 = vmatprep.subr.mxu0 0.0
    %533 = vmatpush1.msra.mxu0 0.0
    %534 = vmatprep.subr.mxu0 0.0
    %535 = vmatpush1.msra.mxu0 0.0
    %536 = vmatprep.subr.mxu0 0.0
    %537 = vmatpush1.msra.mxu0 0.0
    %538 = vmatprep.subr.mxu0 0.0
    %539 = vmatpush1.msra.mxu0 0.0
    %540 = vmatprep.subr.mxu0 0.0
    %541 = vmatpush1.msra.mxu0 0.0
    %542 = vmatprep.subr.mxu0 0.0
    %543 = vmatpush1.msra.mxu0 0.0
    %544 = vmatprep.mubr.f32.mxu0 0.0
    %545 = vmatmul.mubr.f32.gmra.mrb[0].mxu0 %v478
    %v546 = vpop.f32.mrb[0].mxu0
    %v547 = vadd.f32 0.0, %v546
    %v548 = vpop.f32.mrb[0].mxu0
    %549 = vdwg.mxu0
    %v551 = vsel %vm171, %v547, 0
    %553 = vmatprep.subr.mxu0 0.0
    %554 = vmatpush1.msra.mxu0 %v55
    %555 = vmatprep.subr.mxu0 0.0
    %556 = vmatpush1.msra.mxu0 %v56
    %557 = vmatprep.subr.mxu0 0.0
    %558 = vmatpush1.msra.mxu0 %v57
    %559 = vmatprep.subr.mxu0 0.0
    %560 = vmatpush1.msra.mxu0 %v58
    %561 = vmatprep.subr.mxu0 0.0
    %562 = vmatpush1.msra.mxu0 0.0
    %563 = vmatprep.subr.mxu0 0.0
    %564 = vmatpush1.msra.mxu0 0.0
    %565 = vmatprep.subr.mxu0 0.0
    %566 = vmatpush1.msra.mxu0 0.0
    %567 = vmatprep.subr.mxu0 0.0
    %568 = vmatpush1.msra.mxu0 0.0
    %569 = vmatprep.subr.mxu0 0.0
    %570 = vmatpush1.msra.mxu0 0.0
    %571 = vmatprep.subr.mxu0 0.0
    %572 = vmatpush1.msra.mxu0 0.0
    %573 = vmatprep.subr.mxu0 0.0
    %574 = vmatpush1.msra.mxu0 0.0
    %575 = vmatprep.subr.mxu0 0.0
    %576 = vmatpush1.msra.mxu0 0.0
    %577 = vmatprep.subr.mxu0 0.0
    %578 = vmatpush1.msra.mxu0 0.0
    %579 = vmatprep.subr.mxu0 0.0
    %580 = vmatpush1.msra.mxu0 0.0
    %581 = vmatprep.subr.mxu0 0.0
    %582 = vmatpush1.msra.mxu0 0.0
    %583 = vmatprep.subr.mxu0 0.0
    %584 = vmatpush1.msra.mxu0 0.0
    %585 = vmatprep.subr.mxu0 0.0
    %586 = vmatpush1.msra.mxu0 0.0
    %587 = vmatprep.subr.mxu0 0.0
    %588 = vmatpush1.msra.mxu0 0.0
    %589 = vmatprep.subr.mxu0 0.0
    %590 = vmatpush1.msra.mxu0 0.0
    %591 = vmatprep.subr.mxu0 0.0
    %592 = vmatpush1.msra.mxu0 0.0
    %593 = vmatprep.subr.mxu0 0.0
    %594 = vmatpush1.msra.mxu0 0.0
    %595 = vmatprep.subr.mxu0 0.0
    %596 = vmatpush1.msra.mxu0 0.0
    %597 = vmatprep.subr.mxu0 0.0
    %598 = vmatpush1.msra.mxu0 0.0
    %599 = vmatprep.subr.mxu0 0.0
    %600 = vmatpush1.msra.mxu0 0.0
    %601 = vmatprep.subr.mxu0 0.0
    %602 = vmatpush1.msra.mxu0 0.0
    %603 = vmatprep.subr.mxu0 0.0
    %604 = vmatpush1.msra.mxu0 0.0
    %605 = vmatprep.subr.mxu0 0.0
    %606 = vmatpush1.msra.mxu0 0.0
    %607 = vmatprep.subr.mxu0 0.0
    %608 = vmatpush1.msra.mxu0 0.0
    %609 = vmatprep.subr.mxu0 0.0
    %610 = vmatpush1.msra.mxu0 0.0
    %611 = vmatprep.subr.mxu0 0.0
    %612 = vmatpush1.msra.mxu0 0.0
    %613 = vmatprep.subr.mxu0 0.0
    %614 = vmatpush1.msra.mxu0 0.0
    %615 = vmatprep.subr.mxu0 0.0
    %616 = vmatpush1.msra.mxu0 0.0
    %617 = vmatprep.mubr.f32.mxu0 0.0
    %618 = vmatmul.mubr.f32.gmra.mrb[0].mxu0 %v551
    %v619 = vpop.f32.mrb[0].mxu0
    %v620 = vadd.f32 0.0, %v619
    %v621 = vpop.f32.mrb[0].mxu0
    %622 = vdwg.mxu0
    %v623 = vadd.f32 %v170, %v620
    %vm624 = vcmask 253952
    %v625 = vsel %vm624, %v623, 0.0
    %626 = vadd.xlane.f32.xlu0 %v625
    %v627 = vpop.xlane.xlu0 %626
    %v628 = vrcp.pop 32.0
    %v629 = vmul.f32 %v627, %v628
    %v630 = vsub.f32 %v623, %v629
    %v631 = vmul.f32 %v630, %v630
    %v632 = vsel %vm624, %v631, 0.0
    %633 = vadd.xlane.f32.xlu0 %v632
    %v634 = vpop.xlane.xlu0 %633
    %v635 = vmul.f32 %v634, %v628
    %v636 = vadd.f32 %v635, 1e-12
    %v637 = vrsqrt.pop %v636
    %v638 = vmul.f32 %v630, %v637
    %v639 = vmul.f32 %v638, %v34
    %v640 = vadd.f32 %v639, %v35
    %v642 = vsel %vm171, %v640, 0
    %644 = vmatprep.subr.mxu0 0.0
    %645 = vmatpush1.msra.mxu0 %v65
    %646 = vmatprep.subr.mxu0 0.0
    %647 = vmatpush1.msra.mxu0 %v66
    %648 = vmatprep.subr.mxu0 0.0
    %649 = vmatpush1.msra.mxu0 %v67
    %650 = vmatprep.subr.mxu0 0.0
    %651 = vmatpush1.msra.mxu0 %v68
    %652 = vmatprep.subr.mxu0 0.0
    %653 = vmatpush1.msra.mxu0 0.0
    %654 = vmatprep.subr.mxu0 0.0
    %655 = vmatpush1.msra.mxu0 0.0
    %656 = vmatprep.subr.mxu0 0.0
    %657 = vmatpush1.msra.mxu0 0.0
    %658 = vmatprep.subr.mxu0 0.0
    %659 = vmatpush1.msra.mxu0 0.0
    %660 = vmatprep.subr.mxu0 0.0
    %661 = vmatpush1.msra.mxu0 0.0
    %662 = vmatprep.subr.mxu0 0.0
    %663 = vmatpush1.msra.mxu0 0.0
    %664 = vmatprep.subr.mxu0 0.0
    %665 = vmatpush1.msra.mxu0 0.0
    %666 = vmatprep.subr.mxu0 0.0
    %667 = vmatpush1.msra.mxu0 0.0
    %668 = vmatprep.subr.mxu0 0.0
    %669 = vmatpush1.msra.mxu0 0.0
    %670 = vmatprep.subr.mxu0 0.0
    %671 = vmatpush1.msra.mxu0 0.0
    %672 = vmatprep.subr.mxu0 0.0
    %673 = vmatpush1.msra.mxu0 0.0
    %674 = vmatprep.subr.mxu0 0.0
    %675 = vmatpush1.msra.mxu0 0.0
    %676 = vmatprep.subr.mxu0 0.0
    %677 = vmatpush1.msra.mxu0 0.0
    %678 = vmatprep.subr.mxu0 0.0
    %679 = vmatpush1.msra.mxu0 0.0
    %680 = vmatprep.subr.mxu0 0.0
    %681 = vmatpush1.msra.mxu0 0.0
    %682 = vmatprep.subr.mxu0 0.0
    %683 = vmatpush1.msra.mxu0 0.0
    %684 = vmatprep.subr.mxu0 0.0
    %685 = vmatpush1.msra.mxu0 0.0
    %686 = vmatprep.subr.mxu0 0.0
    %687 = vmatpush1.msra.mxu0 0.0
    %688 = vmatprep.subr.mxu0 0.0
    %689 = vmatpush1.msra.mxu0 0.0
    %690 = vmatprep.subr.mxu0 0.0
    %691 = vmatpush1.msra.mxu0 0.0
    %692 = vmatprep.subr.mxu0 0.0
    %693 = vmatpush1.msra.mxu0 0.0
    %694 = vmatprep.subr.mxu0 0.0
    %695 = vmatpush1.msra.mxu0 0.0
    %696 = vmatprep.subr.mxu0 0.0
    %697 = vmatpush1.msra.mxu0 0.0
    %698 = vmatprep.subr.mxu0 0.0
    %699 = vmatpush1.msra.mxu0 0.0
    %700 = vmatprep.subr.mxu0 0.0
    %701 = vmatpush1.msra.mxu0 0.0
    %702 = vmatprep.subr.mxu0 0.0
    %703 = vmatpush1.msra.mxu0 0.0
    %704 = vmatprep.subr.mxu0 0.0
    %705 = vmatpush1.msra.mxu0 0.0
    %706 = vmatprep.subr.mxu0 0.0
    %707 = vmatpush1.msra.mxu0 0.0
    %708 = vmatprep.mubr.f32.mxu0 0.0
    %709 = vmatmul.mubr.f32.gmra.mrb[0].mxu0 %v642
    %v710 = vpop.f32.mrb[0].mxu0
    %v711 = vadd.f32 0.0, %v710
    %v712 = vpop.f32.mrb[0].mxu0
    %713 = vdwg.mxu0
    %v714 = vmul.f32 %v711, 0.5
    %v715 = vmul.f32 %v711, 0.044715
    %v716 = vmul.f32 %v715, %v711
    %v717 = vmul.f32 %v716, %v711
    %v718 = vadd.f32 %v711, %v717
    %v719 = vmul.f32 %v718, 0.7978846
    %v720 = vtanh.pop %v719
    %v721 = vadd.f32 %v720, 1.0
    %v722 = vmul.f32 %v714, %v721
    %723 = vmatprep.subr.mxu0 0.0
    %724 = vmatpush1.msra.mxu0 %v69
    %725 = vmatprep.subr.mxu0 0.0
    %726 = vmatpush1.msra.mxu0 %v70
    %727 = vmatprep.subr.mxu0 0.0
    %728 = vmatpush1.msra.mxu0 %v71
    %729 = vmatprep.subr.mxu0 0.0
    %730 = vmatpush1.msra.mxu0 %v72
    %731 = vmatprep.subr.mxu0 0.0
    %732 = vmatpush1.msra.mxu0 %v73
    %733 = vmatprep.subr.mxu0 0.0
    %734 = vmatpush1.msra.mxu0 %v74
    %735 = vmatprep.subr.mxu0 0.0
    %736 = vmatpush1.msra.mxu0 %v75
    %737 = vmatprep.subr.mxu0 0.0
    %738 = vmatpush1.msra.mxu0 %v76
    %739 = vmatprep.subr.mxu0 0.0
    %740 = vmatpush1.msra.mxu0 %v77
    %741 = vmatprep.subr.mxu0 0.0
    %742 = vmatpush1.msra.mxu0 %v78
    %743 = vmatprep.subr.mxu0 0.0
    %744 = vmatpush1.msra.mxu0 %v79
    %745 = vmatprep.subr.mxu0 0.0
    %746 = vmatpush1.msra.mxu0 %v80
    %747 = vmatprep.subr.mxu0 0.0
    %748 = vmatpush1.msra.mxu0 %v81
    %749 = vmatprep.subr.mxu0 0.0
    %750 = vmatpush1.msra.mxu0 %v82
    %751 = vmatprep.subr.mxu0 0.0
    %752 = vmatpush1.msra.mxu0 %v83
    %753 = vmatprep.subr.mxu0 0.0
    %754 = vmatpush1.msra.mxu0 %v84
    %755 = vmatprep.subr.mxu0 0.0
    %756 = vmatpush1.msra.mxu0 0.0
    %757 = vmatprep.subr.mxu0 0.0
    %758 = vmatpush1.msra.mxu0 0.0
    %759 = vmatprep.subr.mxu0 0.0
    %760 = vmatpush1.msra.mxu0 0.0
    %761 = vmatprep.subr.mxu0 0.0
    %762 = vmatpush1.msra.mxu0 0.0
    %763 = vmatprep.subr.mxu0 0.0
    %764 = vmatpush1.msra.mxu0 0.0
    %765 = vmatprep.subr.mxu0 0.0
    %766 = vmatpush1.msra.mxu0 0.0
    %767 = vmatprep.subr.mxu0 0.0
    %768 = vmatpush1.msra.mxu0 0.0
    %769 = vmatprep.subr.mxu0 0.0
    %770 = vmatpush1.msra.mxu0 0.0
    %771 = vmatprep.subr.mxu0 0.0
    %772 = vmatpush1.msra.mxu0 0.0
    %773 = vmatprep.subr.mxu0 0.0
    %774 = vmatpush1.msra.mxu0 0.0
    %775 = vmatprep.subr.mxu0 0.0
    %776 = vmatpush1.msra.mxu0 0.0
    %777 = vmatprep.subr.mxu0 0.0
    %778 = vmatpush1.msra.mxu0 0.0
    %779 = vmatprep.subr.mxu0 0.0
    %780 = vmatpush1.msra.mxu0 0.0
    %781 = vmatprep.subr.mxu0 0.0
    %782 = vmatpush1.msra.mxu0 0.0
    %783 = vmatprep.subr.mxu0 0.0
    %784 = vmatpush1.msra.mxu0 0.0
    %785 = vmatprep.subr.mxu0 0.0
    %786 = vmatpush1.msra.mxu0 0.0
    %787 = vmatprep.mubr.f32.mxu0 0.0
    %788 = vmatmul.mubr.f32.gmra.mrb[0].mxu0 %v722
    %v789 = vpop.f32.mrb[0].mxu0
    %v790 = vadd.f32 0.0, %v789
    %v791 = vpop.f32.mrb[0].mxu0
    %792 = vdwg.mxu0
    %v793 = vadd.f32 %v640, %v790
    %v794 = vsel %vm624, %v793, 0.0
    %795 = vadd.xlane.f32.xlu0 %v794
    %v796 = vpop.xlane.xlu0 %795
    %v797 = vmul.f32 %v796, %v628
    %v798 = vsub.f32 %v793, %v797
    %v799 = vmul.f32 %v798, %v798
    %v800 = vsel %vm624, %v799, 0.0
    %801 = vadd.xlane.f32.xlu0 %v800
    %v802 = vpop.xlane.xlu0 %801
    %v803 = vmul.f32 %v802, %v628
    %v804 = vadd.f32 %v803, 1e-12
    %v805 = vrsqrt.pop %v804
    %v806 = vmul.f32 %v798, %v805
    %v807 = vmul.f32 %v806, %v36
    %v808 = vadd.f32 %v807, %v37
    %v810 = vsel %vm171, %v808, 0
    %812 = vmatprep.subr.mxu0 0.0
    %813 = vmatpush1.msra.mxu0 %v60
    %814 = vmatprep.subr.mxu0 0.0
    %815 = vmatpush1.msra.mxu0 %v61
    %816 = vmatprep.subr.mxu0 0.0
    %817 = vmatpush1.msra.mxu0 %v62
    %818 = vmatprep.subr.mxu0 0.0
    %819 = vmatpush1.msra.mxu0 %v63
    %820 = vmatprep.subr.mxu0 0.0
    %821 = vmatpush1.msra.mxu0 0.0
    %822 = vmatprep.subr.mxu0 0.0
    %823 = vmatpush1.msra.mxu0 0.0
    %824 = vmatprep.subr.mxu0 0.0
    %825 = vmatpush1.msra.mxu0 0.0
    %826 = vmatprep.subr.mxu0 0.0
    %827 = vmatpush1.msra.mxu0 0.0
    %828 = vmatprep.subr.mxu0 0.0
    %829 = vmatpush1.msra.mxu0 0.0
    %830 = vmatprep.subr.mxu0 0.0
    %831 = vmatpush1.msra.mxu0 0.0
    %832 = vmatprep.subr.mxu0 0.0
    %833 = vmatpush1.msra.mxu0 0.0
    %834 = vmatprep.subr.mxu0 0.0
    %835 = vmatpush1.msra.mxu0 0.0
    %836 = vmatprep.subr.mxu0 0.0
    %837 = vmatpush1.msra.mxu0 0.0
    %838 = vmatprep.subr.mxu0 0.0
    %839 = vmatpush1.msra.mxu0 0.0
    %840 = vmatprep.subr.mxu0 0.0
    %841 = vmatpush1.msra.mxu0 0.0
    %842 = vmatprep.subr.mxu0 0.0
    %843 = vmatpush1.msra.mxu0 0.0
    %844 = vmatprep.subr.mxu0 0.0
    %845 = vmatpush1.msra.mxu0 0.0
    %846 = vmatprep.subr.mxu0 0.0
    %847 = vmatpush1.msra.mxu0 0.0
    %848 = vmatprep.subr.mxu0 0.0
    %849 = vmatpush1.msra.mxu0 0.0
    %850 = vmatprep.subr.mxu0 0.0
    %851 = vmatpush1.msra.mxu0 0.0
    %852 = vmatprep.subr.mxu0 0.0
    %853 = vmatpush1.msra.mxu0 0.0
    %854 = vmatprep.subr.mxu0 0.0
    %855 = vmatpush1.msra.mxu0 0.0
    %856 = vmatprep.subr.mxu0 0.0
    %857 = vmatpush1.msra.mxu0 0.0
    %858 = vmatprep.subr.mxu0 0.0
    %859 = vmatpush1.msra.mxu0 0.0
    %860 = vmatprep.subr.mxu0 0.0
    %861 = vmatpush1.msra.mxu0 0.0
    %862 = vmatprep.subr.mxu0 0.0
    %863 = vmatpush1.msra.mxu0 0.0
    %864 = vmatprep.subr.mxu0 0.0
    %865 = vmatpush1.msra.mxu0 0.0
    %866 = vmatprep.subr.mxu0 0.0
    %867 = vmatpush1.msra.mxu0 0.0
    %868 = vmatprep.subr.mxu0 0.0
    %869 = vmatpush1.msra.mxu0 0.0
    %870 = vmatprep.subr.mxu0 0.0
    %871 = vmatpush1.msra.mxu0 0.0
    %872 = vmatprep.subr.mxu0 0.0
    %873 = vmatpush1.msra.mxu0 0.0
    %874 = vmatprep.subr.mxu0 0.0
    %875 = vmatpush1.msra.mxu0 0.0
    %876 = vmatprep.mubr.f32.mxu0 0.0
    %877 = vmatmul.mubr.f32.gmra.mrb[0].mxu0 %v810
    %v878 = vpop.f32.mrb[0].mxu0
    %v879 = vadd.f32 %v38, %v878
    %v880 = vpop.f32.mrb[0].mxu0
    %881 = vdwg.mxu0
    %v882 = vtanh.pop %v879
    %s883 = sld [smem:[#allocation3 + $0x80]]
    %s884 = scalar_lea.vmem %s2, %s883
    %v885 = vld [vmem:[%s884] sm:$0x1]
    %s886 = sld [smem:[#allocation3 + $0x81]]
    %s887 = scalar_lea.vmem %s2, %s886
    %v888 = vld [vmem:[%s887] sm:$0x1]
    %s889 = sld [smem:[#allocation3 + $0x82]]
    %s890 = scalar_lea.vmem %s2, %s889
    %v891 = vld [vmem:[%s890] sm:$0x1]
    %s892 = sld [smem:[#allocation3 + $0x83]]
    %s893 = scalar_lea.vmem %s2, %s892
    %v894 = vld [vmem:[%s893] sm:$0x1]
    %s895 = sld [smem:[#allocation3 + $0x84]]
    %s896 = scalar_lea.vmem %s2, %s895
    %v897 = vld [vmem:[%s896] sm:$0x1]
    %s898 = sld [smem:[#allocation3 + $0x85]]
    %s899 = scalar_lea.vmem %s2, %s898
    %v900 = vld [vmem:[%s899] sm:$0x1]
    %s901 = sld [smem:[#allocation3 + $0x86]]
    %s902 = scalar_lea.vmem %s2, %s901
    %v903 = vld [vmem:[%s902] sm:$0x1]
    %s904 = sld [smem:[#allocation3 + $0x87]]
    %s905 = scalar_lea.vmem %s2, %s904
    %v906 = vld [vmem:[%s905] sm:$0x1]
    %v908 = vlaneseq
    %v909 = vshrl.u32 %v908, 7
    %v910 = vsub.s32 0, %v909
    %v911 = vrot.slane %v888, %v910
    %v914 = vlaneseq
    %v915 = vshrl.u32 %v914, 7
    %v916 = vsub.s32 0, %v915
    %v917 = vrot.slane %v891, %v916
    %v920 = vlaneseq
    %v921 = vshrl.u32 %v920, 7
    %v922 = vsub.s32 0, %v921
    %v923 = vrot.slane %v894, %v922
    %v926 = vlaneseq
    %v927 = vshrl.u32 %v926, 7
    %v928 = vsub.s32 0, %v927
    %v929 = vrot.slane %v897, %v928
    %v932 = vlaneseq
    %v933 = vshrl.u32 %v932, 7
    %v934 = vsub.s32 0, %v933
    %v935 = vrot.slane %v900, %v934
    %v938 = vlaneseq
    %v939 = vshrl.u32 %v938, 7
    %v940 = vsub.s32 0, %v939
    %v941 = vrot.slane %v903, %v940
    %v944 = vlaneseq
    %v945 = vshrl.u32 %v944, 7
    %v946 = vsub.s32 0, %v945
    %v947 = vrot.slane %v906, %v946
    %v949 = vsel %vm151, %v885, %v911
    %v950 = vsel %vm153, %v949, %v917
    %v951 = vsel %vm155, %v950, %v923
    %v952 = vsel %vm157, %v951, %v929
    %v953 = vsel %vm159, %v952, %v935
    %v954 = vsel %vm161, %v953, %v941
    %v955 = vsel %vm163, %v954, %v947
    %v956 = vadd.f32 %v955, %v64
    %v957 = vadd.f32 %v956, %v169
    %v959 = vsel %vm171, %v957, 0
    %961 = vmatprep.subr.mxu0 0.0
    %962 = vmatpush1.msra.mxu0 %v45
    %963 = vmatprep.subr.mxu0 0.0
    %964 = vmatpush1.msra.mxu0 %v46
    %965 = vmatprep.subr.mxu0 0.0
    %966 = vmatpush1.msra.mxu0 %v47
    %967 = vmatprep.subr.mxu0 0.0
    %968 = vmatpush1.msra.mxu0 %v48
    %969 = vmatprep.subr.mxu0 0.0
    %970 = vmatpush1.msra.mxu0 0.0
    %971 = vmatprep.subr.mxu0 0.0
    %972 = vmatpush1.msra.mxu0 0.0
    %973 = vmatprep.subr.mxu0 0.0
    %974 = vmatpush1.msra.mxu0 0.0
    %975 = vmatprep.subr.mxu0 0.0
    %976 = vmatpush1.msra.mxu0 0.0
    %977 = vmatprep.subr.mxu0 0.0
    %978 = vmatpush1.msra.mxu0 0.0
    %979 = vmatprep.subr.mxu0 0.0
    %980 = vmatpush1.msra.mxu0 0.0
    %981 = vmatprep.subr.mxu0 0.0
    %982 = vmatpush1.msra.mxu0 0.0
    %983 = vmatprep.subr.mxu0 0.0
    %984 = vmatpush1.msra.mxu0 0.0
    %985 = vmatprep.subr.mxu0 0.0
    %986 = vmatpush1.msra.mxu0 0.0
    %987 = vmatprep.subr.mxu0 0.0
    %988 = vmatpush1.msra.mxu0 0.0
    %989 = vmatprep.subr.mxu0 0.0
    %990 = vmatpush1.msra.mxu0 0.0
    %991 = vmatprep.subr.mxu0 0.0
    %992 = vmatpush1.msra.mxu0 0.0
    %993 = vmatprep.subr.mxu0 0.0
    %994 = vmatpush1.msra.mxu0 0.0
    %995 = vmatprep.subr.mxu0 0.0
    %996 = vmatpush1.msra.mxu0 0.0
    %997 = vmatprep.subr.mxu0 0.0
    %998 = vmatpush1.msra.mxu0 0.0
    %999 = vmatprep.subr.mxu0 0.0
    %1000 = vmatpush1.msra.mxu0 0.0
    %1001 = vmatprep.subr.mxu0 0.0
    %1002 = vmatpush1.msra.mxu0 0.0
    %1003 = vmatprep.subr.mxu0 0.0
    %1004 = vmatpush1.msra.mxu0 0.0
    %1005 = vmatprep.subr.mxu0 0.0
    %1006 = vmatpush1.msra.mxu0 0.0
    %1007 = vmatprep.subr.mxu0 0.0
    %1008 = vmatpush1.msra.mxu0 0.0
    %1009 = vmatprep.subr.mxu0 0.0
    %1010 = vmatpush1.msra.mxu0 0.0
    %1011 = vmatprep.subr.mxu0 0.0
    %1012 = vmatpush1.msra.mxu0 0.0
    %1013 = vmatprep.subr.mxu0 0.0
    %1014 = vmatpush1.msra.mxu0 0.0
    %1015 = vmatprep.subr.mxu0 0.0
    %1016 = vmatpush1.msra.mxu0 0.0
    %1017 = vmatprep.subr.mxu0 0.0
    %1018 = vmatpush1.msra.mxu0 0.0
    %1019 = vmatprep.subr.mxu0 0.0
    %1020 = vmatpush1.msra.mxu0 0.0
    %1021 = vmatprep.subr.mxu0 0.0
    %1022 = vmatpush1.msra.mxu0 0.0
    %1023 = vmatprep.subr.mxu0 0.0
    %1024 = vmatpush1.msra.mxu0 0.0
    %1025 = vmatprep.mubr.f32.mxu0 0.0
    %1026 = vmatmul.mubr.f32.gmra.mrb[0].mxu0 %v959
    %v1027 = vpop.f32.mrb[0].mxu0
    %v1028 = vadd.f32 0.0, %v1027
    %v1029 = vpop.f32.mrb[0].mxu0
    %1030 = vdwg.mxu0
    %1031 = vmatprep.subr.mxu0 0.0
    %1032 = vmatpush1.msra.mxu0 %v50
    %1033 = vmatprep.subr.mxu0 0.0
    %1034 = vmatpush1.msra.mxu0 %v51
    %1035 = vmatprep.subr.mxu0 0.0
    %1036 = vmatpush1.msra.mxu0 %v52
    %1037 = vmatprep.subr.mxu0 0.0
    %1038 = vmatpush1.msra.mxu0 %v53
    %1039 = vmatprep.subr.mxu0 0.0
    %1040 = vmatpush1.msra.mxu0 0.0
    %1041 = vmatprep.subr.mxu0 0.0
    %1042 = vmatpush1.msra.mxu0 0.0
    %1043 = vmatprep.subr.mxu0 0.0
    %1044 = vmatpush1.msra.mxu0 0.0
    %1045 = vmatprep.subr.mxu0 0.0
    %1046 = vmatpush1.msra.mxu0 0.0
    %1047 = vmatprep.subr.mxu0 0.0
    %1048 = vmatpush1.msra.mxu0 0.0
    %1049 = vmatprep.subr.mxu0 0.0
    %1050 = vmatpush1.msra.mxu0 0.0
    %1051 = vmatprep.subr.mxu0 0.0
    %1052 = vmatpush1.msra.mxu0 0.0
    %1053 = vmatprep.subr.mxu0 0.0
    %1054 = vmatpush1.msra.mxu0 0.0
    %1055 = vmatprep.subr.mxu0 0.0
    %1056 = vmatpush1.msra.mxu0 0.0
    %1057 = vmatprep.subr.mxu0 0.0
    %1058 = vmatpush1.msra.mxu0 0.0
    %1059 = vmatprep.subr.mxu0 0.0
    %1060 = vmatpush1.msra.mxu0 0.0
    %1061 = vmatprep.subr.mxu0 0.0
    %1062 = vmatpush1.msra.mxu0 0.0
    %1063 = vmatprep.subr.mxu0 0.0
    %1064 = vmatpush1.msra.mxu0 0.0
    %1065 = vmatprep.subr.mxu0 0.0
    %1066 = vmatpush1.msra.mxu0 0.0
    %1067 = vmatprep.subr.mxu0 0.0
    %1068 = vmatpush1.msra.mxu0 0.0
    %1069 = vmatprep.subr.mxu0 0.0
    %1070 = vmatpush1.msra.mxu0 0.0
    %1071 = vmatprep.subr.mxu0 0.0
    %1072 = vmatpush1.msra.mxu0 0.0
    %1073 = vmatprep.subr.mxu0 0.0
    %1074 = vmatpush1.msra.mxu0 0.0
    %1075 = vmatprep.subr.mxu0 0.0
    %1076 = vmatpush1.msra.mxu0 0.0
    %1077 = vmatprep.subr.mxu0 0.0
    %1078 = vmatpush1.msra.mxu0 0.0
    %1079 = vmatprep.subr.mxu0 0.0
    %1080 = vmatpush1.msra.mxu0 0.0
    %1081 = vmatprep.subr.mxu0 0.0
    %1082 = vmatpush1.msra.mxu0 0.0
    %1083 = vmatprep.subr.mxu0 0.0
    %1084 = vmatpush1.msra.mxu0 0.0
    %1085 = vmatprep.subr.mxu0 0.0
    %1086 = vmatpush1.msra.mxu0 0.0
    %1087 = vmatprep.subr.mxu0 0.0
    %1088 = vmatpush1.msra.mxu0 0.0
    %1089 = vmatprep.subr.mxu0 0.0
    %1090 = vmatpush1.msra.mxu0 0.0
    %1091 = vmatprep.subr.mxu0 0.0
    %1092 = vmatpush1.msra.mxu0 0.0
    %1093 = vmatprep.subr.mxu0 0.0
    %1094 = vmatpush1.msra.mxu0 0.0
    %1095 = vmatprep.mubr.f32.mxu0 0.0
    %1096 = vmatmul.mubr.f32.gmra.mrb[0].mxu0 %v959
    %v1097 = vpop.f32.mrb[0].mxu0
    %v1098 = vadd.f32 0.0, %v1097
    %v1099 = vpop.f32.mrb[0].mxu0
    %1100 = vdwg.mxu0
    %1101 = vmatprep.subr.mxu0 0.0
    %1102 = vmatpush1.msra.mxu0 %v40
    %1103 = vmatprep.subr.mxu0 0.0
    %1104 = vmatpush1.msra.mxu0 %v41
    %1105 = vmatprep.subr.mxu0 0.0
    %1106 = vmatpush1.msra.mxu0 %v42
    %1107 = vmatprep.subr.mxu0 0.0
    %1108 = vmatpush1.msra.mxu0 %v43
    %1109 = vmatprep.subr.mxu0 0.0
    %1110 = vmatpush1.msra.mxu0 0.0
    %1111 = vmatprep.subr.mxu0 0.0
    %1112 = vmatpush1.msra.mxu0 0.0
    %1113 = vmatprep.subr.mxu0 0.0
    %1114 = vmatpush1.msra.mxu0 0.0
    %1115 = vmatprep.subr.mxu0 0.0
    %1116 = vmatpush1.msra.mxu0 0.0
    %1117 = vmatprep.subr.mxu0 0.0
    %1118 = vmatpush1.msra.mxu0 0.0
    %1119 = vmatprep.subr.mxu0 0.0
    %1120 = vmatpush1.msra.mxu0 0.0
    %1121 = vmatprep.subr.mxu0 0.0
    %1122 = vmatpush1.msra.mxu0 0.0
    %1123 = vmatprep.subr.mxu0 0.0
    %1124 = vmatpush1.msra.mxu0 0.0
    %1125 = vmatprep.subr.mxu0 0.0
    %1126 = vmatpush1.msra.mxu0 0.0
    %1127 = vmatprep.subr.mxu0 0.0
    %1128 = vmatpush1.msra.mxu0 0.0
    %1129 = vmatprep.subr.mxu0 0.0
    %1130 = vmatpush1.msra.mxu0 0.0
    %1131 = vmatprep.subr.mxu0 0.0
    %1132 = vmatpush1.msra.mxu0 0.0
    %1133 = vmatprep.subr.mxu0 0.0
    %1134 = vmatpush1.msra.mxu0 0.0
    %1135 = vmatprep.subr.mxu0 0.0
    %1136 = vmatpush1.msra.mxu0 0.0
    %1137 = vmatprep.subr.mxu0 0.0
    %1138 = vmatpush1.msra.mxu0 0.0
    %1139 = vmatprep.subr.mxu0 0.0
    %1140 = vmatpush1.msra.mxu0 0.0
    %1141 = vmatprep.subr.mxu0 0.0
    %1142 = vmatpush1.msra.mxu0 0.0
    %1143 = vmatprep.subr.mxu0 0.0
    %1144 = vmatpush1.msra.mxu0 0.0
    %1145 = vmatprep.subr.mxu0 0.0
    %1146 = vmatpush1.msra.mxu0 0.0
    %1147 = vmatprep.subr.mxu0 0.0
    %1148 = vmatpush1.msra.mxu0 0.0
    %1149 = vmatprep.subr.mxu0 0.0
    %1150 = vmatpush1.msra.mxu0 0.0
    %1151 = vmatprep.subr.mxu0 0.0
    %1152 = vmatpush1.msra.mxu0 0.0
    %1153 = vmatprep.subr.mxu0 0.0
    %1154 = vmatpush1.msra.mxu0 0.0
    %1155 = vmatprep.subr.mxu0 0.0
    %1156 = vmatpush1.msra.mxu0 0.0
    %1157 = vmatprep.subr.mxu0 0.0
    %1158 = vmatpush1.msra.mxu0 0.0
    %1159 = vmatprep.subr.mxu0 0.0
    %1160 = vmatpush1.msra.mxu0 0.0
    %1161 = vmatprep.subr.mxu0 0.0
    %1162 = vmatpush1.msra.mxu0 0.0
    %1163 = vmatprep.subr.mxu0 0.0
    %1164 = vmatpush1.msra.mxu0 0.0
    %1165 = vmatprep.mubr.f32.mxu0 0.0
    %1166 = vmatmul.mubr.f32.gmra.mrb[0].mxu0 %v959
    %v1167 = vpop.f32.mrb[0].mxu0
    %v1168 = vadd.f32 0.0, %v1167
    %v1169 = vpop.f32.mrb[0].mxu0
    %1170 = vdwg.mxu0
    %v1171 = vld [vmem:[%s1 + $0x1] sm:$0x1]
    %v1172 = vsub.f32 %v1171, 1.0
    %v1173 = vmul.f32 %v1172, 1e+09
    %v1175 = vsel %vm171, %v1168, 0
    %v1178 = vsel %vm171, %v1028, 0
    %1180 = vmatprep.subr.mxu0 0.0
    %1181 = vmatpush1.xpose.msra.mxu0 %v1178
    %1182 = vmatprep.subr.mxu0 0.0
    %1183 = vmatpush1.xpose.msra.mxu0 0.0
    %1184 = vmatprep.subr.mxu0 0.0
    %1185 = vmatpush1.xpose.msra.mxu0 0.0
    %1186 = vmatprep.subr.mxu0 0.0
    %1187 = vmatpush1.xpose.msra.mxu0 0.0
    %1188 = vmatprep.subr.mxu0 0.0
    %1189 = vmatpush1.xpose.msra.mxu0 0.0
    %1190 = vmatprep.subr.mxu0 0.0
    %1191 = vmatpush1.xpose.msra.mxu0 0.0
    %1192 = vmatprep.subr.mxu0 0.0
    %1193 = vmatpush1.xpose.msra.mxu0 0.0
    %1194 = vmatprep.subr.mxu0 0.0
    %1195 = vmatpush1.xpose.msra.mxu0 0.0
    %1196 = vmatprep.subr.mxu0 0.0
    %1197 = vmatpush1.xpose.msra.mxu0 0.0
    %1198 = vmatprep.subr.mxu0 0.0
    %1199 = vmatpush1.xpose.msra.mxu0 0.0
    %1200 = vmatprep.subr.mxu0 0.0
    %1201 = vmatpush1.xpose.msra.mxu0 0.0
    %1202 = vmatprep.subr.mxu0 0.0
    %1203 = vmatpush1.xpose.msra.mxu0 0.0
    %1204 = vmatprep.subr.mxu0 0.0
    %1205 = vmatpush1.xpose.msra.mxu0 0.0
    %1206 = vmatprep.subr.mxu0 0.0
    %1207 = vmatpush1.xpose.msra.mxu0 0.0
    %1208 = vmatprep.subr.mxu0 0.0
    %1209 = vmatpush1.xpose.msra.mxu0 0.0
    %1210 = vmatprep.subr.mxu0 0.0
    %1211 = vmatpush1.xpose.msra.mxu0 0.0
    %1212 = vmatprep.subr.mxu0 0.0
    %1213 = vmatpush1.xpose.msra.mxu0 0.0
    %1214 = vmatprep.subr.mxu0 0.0
    %1215 = vmatpush1.xpose.msra.mxu0 0.0
    %1216 = vmatprep.subr.mxu0 0.0
    %1217 = vmatpush1.xpose.msra.mxu0 0.0
    %1218 = vmatprep.subr.mxu0 0.0
    %1219 = vmatpush1.xpose.msra.mxu0 0.0
    %1220 = vmatprep.subr.mxu0 0.0
    %1221 = vmatpush1.xpose.msra.mxu0 0.0
    %1222 = vmatprep.subr.mxu0 0.0
    %1223 = vmatpush1.xpose.msra.mxu0 0.0
    %1224 = vmatprep.subr.mxu0 0.0
    %1225 = vmatpush1.xpose.msra.mxu0 0.0
    %1226 = vmatprep.subr.mxu0 0.0
    %1227 = vmatpush1.xpose.msra.mxu0 0.0
    %1228 = vmatprep.subr.mxu0 0.0
    %1229 = vmatpush1.xpose.msra.mxu0 0.0
    %1230 = vmatprep.subr.mxu0 0.0
    %1231 = vmatpush1.xpose.msra.mxu0 0.0
    %1232 = vmatprep.subr.mxu0 0.0
    %1233 = vmatpush1.xpose.msra.mxu0 0.0
    %1234 = vmatprep.subr.mxu0 0.0
    %1235 = vmatpush1.xpose.msra.mxu0 0.0
    %1236 = vmatprep.subr.mxu0 0.0
    %1237 = vmatpush1.xpose.msra.mxu0 0.0
    %1238 = vmatprep.subr.mxu0 0.0
    %1239 = vmatpush1.xpose.msra.mxu0 0.0
    %1240 = vmatprep.subr.mxu0 0.0
    %1241 = vmatpush1.xpose.msra.mxu0 0.0
    %1242 = vmatprep.subr.mxu0 0.0
    %1243 = vmatpush1.xpose.msra.mxu0 0.0
    %1244 = vmatprep.mubr.f32.mxu0 0.0
    %1245 = vmatmul.mubr.f32.gmra.mrb[0].mxu0 %v1175
    %v1246 = vpop.f32.mrb[0].mxu0
    %v1247 = vadd.f32 %v1173, %v1246
    %v1248 = vpop.f32.mrb[0].mxu0
    %1249 = vdwg.mxu0
    %v1250 = vsel %vm464, %v1247, -inf
    %1251 = vmax.xlane.f32.xlu0 %v1250
    %v1252 = vpop.xlane.xlu0 %1251
    %v1253 = vsub.f32 %v1247, %v1252
    %v1254 = vmul.f32 %v1253, 1.442695
    %v1255 = vpow.pop %v1254
    %v1256 = vsel %vm464, %v1255, 0.0
    %1257 = vadd.xlane.f32.xlu0 %v1256
    %v1258 = vpop.xlane.xlu0 %1257
    %v1259 = vrcp.pop %v1258
    %v1260 = vmul.f32 %v1255, %v1259
    %v1262 = vsel %vm476, %v1260, 0
    %1264 = vmatprep.subr.mxu0 0.0
    %1265 = vmatpush1.msra.mxu0 %v1098
    %1266 = vmatprep.subr.mxu0 0.0
    %1267 = vmatpush1.msra.mxu0 0.0
    %1268 = vmatprep.subr.mxu0 0.0
    %1269 = vmatpush1.msra.mxu0 0.0
    %1270 = vmatprep.subr.mxu0 0.0
    %1271 = vmatpush1.msra.mxu0 0.0
    %1272 = vmatprep.subr.mxu0 0.0
    %1273 = vmatpush1.msra.mxu0 0.0
    %1274 = vmatprep.subr.mxu0 0.0
    %1275 = vmatpush1.msra.mxu0 0.0
    %1276 = vmatprep.subr.mxu0 0.0
    %1277 = vmatpush1.msra.mxu0 0.0
    %1278 = vmatprep.subr.mxu0 0.0
    %1279 = vmatpush1.msra.mxu0 0.0
    %1280 = vmatprep.subr.mxu0 0.0
    %1281 = vmatpush1.msra.mxu0 0.0
    %1282 = vmatprep.subr.mxu0 0.0
    %1283 = vmatpush1.msra.mxu0 0.0
    %1284 = vmatprep.subr.mxu0 0.0
    %1285 = vmatpush1.msra.mxu0 0.0
    %1286 = vmatprep.subr.mxu0 0.0
    %1287 = vmatpush1.msra.mxu0 0.0
    %1288 = vmatprep.subr.mxu0 0.0
    %1289 = vmatpush1.msra.mxu0 0.0
    %1290 = vmatprep.subr.mxu0 0.0
    %1291 = vmatpush1.msra.mxu0 0.0
    %1292 = vmatprep.subr.mxu0 0.0
    %1293 = vmatpush1.msra.mxu0 0.0
    %1294 = vmatprep.subr.mxu0 0.0
    %1295 = vmatpush1.msra.mxu0 0.0
    %1296 = vmatprep.subr.mxu0 0.0
    %1297 = vmatpush1.msra.mxu0 0.0
    %1298 = vmatprep.subr.mxu0 0.0
    %1299 = vmatpush1.msra.mxu0 0.0
    %1300 = vmatprep.subr.mxu0 0.0
    %1301 = vmatpush1.msra.mxu0 0.0
    %1302 = vmatprep.subr.mxu0 0.0
    %1303 = vmatpush1.msra.mxu0 0.0
    %1304 = vmatprep.subr.mxu0 0.0
    %1305 = vmatpush1.msra.mxu0 0.0
    %1306 = vmatprep.subr.mxu0 0.0
    %1307 = vmatpush1.msra.mxu0 0.0
    %1308 = vmatprep.subr.mxu0 0.0
    %1309 = vmatpush1.msra.mxu0 0.0
    %1310 = vmatprep.subr.mxu0 0.0
    %1311 = vmatpush1.msra.mxu0 0.0
    %1312 = vmatprep.subr.mxu0 0.0
    %1313 = vmatpush1.msra.mxu0 0.0
    %1314 = vmatprep.subr.mxu0 0.0
    %1315 = vmatpush1.msra.mxu0 0.0
    %1316 = vmatprep.subr.mxu0 0.0
    %1317 = vmatpush1.msra.mxu0 0.0
    %1318 = vmatprep.subr.mxu0 0.0
    %1319 = vmatpush1.msra.mxu0 0.0
    %1320 = vmatprep.subr.mxu0 0.0
    %1321 = vmatpush1.msra.mxu0 0.0
    %1322 = vmatprep.subr.mxu0 0.0
    %1323 = vmatpush1.msra.mxu0 0.0
    %1324 = vmatprep.subr.mxu0 0.0
    %1325 = vmatpush1.msra.mxu0 0.0
    %1326 = vmatprep.subr.mxu0 0.0
    %1327 = vmatpush1.msra.mxu0 0.0
    %1328 = vmatprep.mubr.f32.mxu0 0.0
    %1329 = vmatmul.mubr.f32.gmra.mrb[0].mxu0 %v1262
    %v1330 = vpop.f32.mrb[0].mxu0
    %v1331 = vadd.f32 0.0, %v1330
    %v1332 = vpop.f32.mrb[0].mxu0
    %1333 = vdwg.mxu0
    %v1335 = vsel %vm171, %v1331, 0
    %1337 = vmatprep.subr.mxu0 0.0
    %1338 = vmatpush1.msra.mxu0 %v55
    %1339 = vmatprep.subr.mxu0 0.0
    %1340 = vmatpush1.msra.mxu0 %v56
    %1341 = vmatprep.subr.mxu0 0.0
    %1342 = vmatpush1.msra.mxu0 %v57
    %1343 = vmatprep.subr.mxu0 0.0
    %1344 = vmatpush1.msra.mxu0 %v58
    %1345 = vmatprep.subr.mxu0 0.0
    %1346 = vmatpush1.msra.mxu0 0.0
    %1347 = vmatprep.subr.mxu0 0.0
    %1348 = vmatpush1.msra.mxu0 0.0
    %1349 = vmatprep.subr.mxu0 0.0
    %1350 = vmatpush1.msra.mxu0 0.0
    %1351 = vmatprep.subr.mxu0 0.0
    %1352 = vmatpush1.msra.mxu0 0.0
    %1353 = vmatprep.subr.mxu0 0.0
    %1354 = vmatpush1.msra.mxu0 0.0
    %1355 = vmatprep.subr.mxu0 0.0
    %1356 = vmatpush1.msra.mxu0 0.0
    %1357 = vmatprep.subr.mxu0 0.0
    %1358 = vmatpush1.msra.mxu0 0.0
    %1359 = vmatprep.subr.mxu0 0.0
    %1360 = vmatpush1.msra.mxu0 0.0
    %1361 = vmatprep.subr.mxu0 0.0
    %1362 = vmatpush1.msra.mxu0 0.0
    %1363 = vmatprep.subr.mxu0 0.0
    %1364 = vmatpush1.msra.mxu0 0.0
    %1365 = vmatprep.subr.mxu0 0.0
    %1366 = vmatpush1.msra.mxu0 0.0
    %1367 = vmatprep.subr.mxu0 0.0
    %1368 = vmatpush1.msra.mxu0 0.0
    %1369 = vmatprep.subr.mxu0 0.0
    %1370 = vmatpush1.msra.mxu0 0.0
    %1371 = vmatprep.subr.mxu0 0.0
    %1372 = vmatpush1.msra.mxu0 0.0
    %1373 = vmatprep.subr.mxu0 0.0
    %1374 = vmatpush1.msra.mxu0 0.0
    %1375 = vmatprep.subr.mxu0 0.0
    %1376 = vmatpush1.msra.mxu0 0.0
    %1377 = vmatprep.subr.mxu0 0.0
    %1378 = vmatpush1.msra.mxu0 0.0
    %1379 = vmatprep.subr.mxu0 0.0
    %1380 = vmatpush1.msra.mxu0 0.0
    %1381 = vmatprep.subr.mxu0 0.0
    %1382 = vmatpush1.msra.mxu0 0.0
    %1383 = vmatprep.subr.mxu0 0.0
    %1384 = vmatpush1.msra.mxu0 0.0
    %1385 = vmatprep.subr.mxu0 0.0
    %1386 = vmatpush1.msra.mxu0 0.0
    %1387 = vmatprep.subr.mxu0 0.0
    %1388 = vmatpush1.msra.mxu0 0.0
    %1389 = vmatprep.subr.mxu0 0.0
    %1390 = vmatpush1.msra.mxu0 0.0
    %1391 = vmatprep.subr.mxu0 0.0
    %1392 = vmatpush1.msra.mxu0 0.0
    %1393 = vmatprep.subr.mxu0 0.0
    %1394 = vmatpush1.msra.mxu0 0.0
    %1395 = vmatprep.subr.mxu0 0.0
    %1396 = vmatpush1.msra.mxu0 0.0
    %1397 = vmatprep.subr.mxu0 0.0
    %1398 = vmatpush1.msra.mxu0 0.0
    %1399 = vmatprep.subr.mxu0 0.0
    %1400 = vmatpush1.msra.mxu0 0.0
    %1401 = vmatprep.mubr.f32.mxu0 0.0
    %1402 = vmatmul.mubr.f32.gmra.mrb[0].mxu0 %v1335
    %v1403 = vpop.f32.mrb[0].mxu0
    %v1404 = vadd.f32 0.0, %v1403
    %v1405 = vpop.f32.mrb[0].mxu0
    %1406 = vdwg.mxu0
    %v1407 = vadd.f32 %v957, %v1404
    %v1408 = vsel %vm624, %v1407, 0.0
    %1409 = vadd.xlane.f32.xlu0 %v1408
    %v1410 = vpop.xlane.xlu0 %1409
    %v1411 = vmul.f32 %v1410, %v628
    %v1412 = vsub.f32 %v1407, %v1411
    %v1413 = vmul.f32 %v1412, %v1412
    %v1414 = vsel %vm624, %v1413, 0.0
    %1415 = vadd.xlane.f32.xlu0 %v1414
    %v1416 = vpop.xlane.xlu0 %1415
    %v1417 = vmul.f32 %v1416, %v628
    %v1418 = vadd.f32 %v1417, 1e-12
    %v1419 = vrsqrt.pop %v1418
    %v1420 = vmul.f32 %v1412, %v1419
    %v1421 = vmul.f32 %v1420, %v34
    %v1422 = vadd.f32 %v1421, %v35
    %v1424 = vsel %vm171, %v1422, 0
    %1426 = vmatprep.subr.mxu0 0.0
    %1427 = vmatpush1.msra.mxu0 %v65
    %1428 = vmatprep.subr.mxu0 0.0
    %1429 = vmatpush1.msra.mxu0 %v66
    %1430 = vmatprep.subr.mxu0 0.0
    %1431 = vmatpush1.msra.mxu0 %v67
    %1432 = vmatprep.subr.mxu0 0.0
    %1433 = vmatpush1.msra.mxu0 %v68
    %1434 = vmatprep.subr.mxu0 0.0
    %1435 = vmatpush1.msra.mxu0 0.0
    %1436 = vmatprep.subr.mxu0 0.0
    %1437 = vmatpush1.msra.mxu0 0.0
    %1438 = vmatprep.subr.mxu0 0.0
    %1439 = vmatpush1.msra.mxu0 0.0
    %1440 = vmatprep.subr.mxu0 0.0
    %1441 = vmatpush1.msra.mxu0 0.0
    %1442 = vmatprep.subr.mxu0 0.0
    %1443 = vmatpush1.msra.mxu0 0.0
    %1444 = vmatprep.subr.mxu0 0.0
    %1445 = vmatpush1.msra.mxu0 0.0
    %1446 = vmatprep.subr.mxu0 0.0
    %1447 = vmatpush1.msra.mxu0 0.0
    %1448 = vmatprep.subr.mxu0 0.0
    %1449 = vmatpush1.msra.mxu0 0.0
    %1450 = vmatprep.subr.mxu0 0.0
    %1451 = vmatpush1.msra.mxu0 0.0
    %1452 = vmatprep.subr.mxu0 0.0
    %1453 = vmatpush1.msra.mxu0 0.0
    %1454 = vmatprep.subr.mxu0 0.0
    %1455 = vmatpush1.msra.mxu0 0.0
    %1456 = vmatprep.subr.mxu0 0.0
    %1457 = vmatpush1.msra.mxu0 0.0
    %1458 = vmatprep.subr.mxu0 0.0
    %1459 = vmatpush1.msra.mxu0 0.0
    %1460 = vmatprep.subr.mxu0 0.0
    %1461 = vmatpush1.msra.mxu0 0.0
    %1462 = vmatprep.subr.mxu0 0.0
    %1463 = vmatpush1.msra.mxu0 0.0
    %1464 = vmatprep.subr.mxu0 0.0
    %1465 = vmatpush1.msra.mxu0 0.0
    %1466 = vmatprep.subr.mxu0 0.0
    %1467 = vmatpush1.msra.mxu0 0.0
    %1468 = vmatprep.subr.mxu0 0.0
    %1469 = vmatpush1.msra.mxu0 0.0
    %1470 = vmatprep.subr.mxu0 0.0
    %1471 = vmatpush1.msra.mxu0 0.0
    %1472 = vmatprep.subr.mxu0 0.0
    %1473 = vmatpush1.msra.mxu0 0.0
    %1474 = vmatprep.subr.mxu0 0.0
    %1475 = vmatpush1.msra.mxu0 0.0
    %1476 = vmatprep.subr.mxu0 0.0
    %1477 = vmatpush1.msra.mxu0 0.0
    %1478 = vmatprep.subr.mxu0 0.0
    %1479 = vmatpush1.msra.mxu0 0.0
    %1480 = vmatprep.subr.mxu0 0.0
    %1481 = vmatpush1.msra.mxu0 0.0
    %1482 = vmatprep.subr.mxu0 0.0
    %1483 = vmatpush1.msra.mxu0 0.0
    %1484 = vmatprep.subr.mxu0 0.0
    %1485 = vmatpush1.msra.mxu0 0.0
    %1486 = vmatprep.subr.mxu0 0.0
    %1487 = vmatpush1.msra.mxu0 0.0
    %1488 = vmatprep.subr.mxu0 0.0
    %1489 = vmatpush1.msra.mxu0 0.0
    %1490 = vmatprep.mubr.f32.mxu0 0.0
    %1491 = vmatmul.mubr.f32.gmra.mrb[0].mxu0 %v1424
    %v1492 = vpop.f32.mrb[0].mxu0
    %v1493 = vadd.f32 0.0, %v1492
    %v1494 = vpop.f32.mrb[0].mxu0
    %1495 = vdwg.mxu0
    %v1496 = vmul.f32 %v1493, 0.5
    %v1497 = vmul.f32 %v1493, 0.044715
    %v1498 = vmul.f32 %v1497, %v1493
    %v1499 = vmul.f32 %v1498, %v1493
    %v1500 = vadd.f32 %v1493, %v1499
    %v1501 = vmul.f32 %v1500, 0.7978846
    %v1502 = vtanh.pop %v1501
    %v1503 = vadd.f32 %v1502, 1.0
    %v1504 = vmul.f32 %v1496, %v1503
    %1505 = vmatprep.subr.mxu0 0.0
    %1506 = vmatpush1.msra.mxu0 %v69
    %1507 = vmatprep.subr.mxu0 0.0
    %1508 = vmatpush1.msra.mxu0 %v70
    %1509 = vmatprep.subr.mxu0 0.0
    %1510 = vmatpush1.msra.mxu0 %v71
    %1511 = vmatprep.subr.mxu0 0.0
    %1512 = vmatpush1.msra.mxu0 %v72
    %1513 = vmatprep.subr.mxu0 0.0
    %1514 = vmatpush1.msra.mxu0 %v73
    %1515 = vmatprep.subr.mxu0 0.0
    %1516 = vmatpush1.msra.mxu0 %v74
    %1517 = vmatprep.subr.mxu0 0.0
    %1518 = vmatpush1.msra.mxu0 %v75
    %1519 = vmatprep.subr.mxu0 0.0
    %1520 = vmatpush1.msra.mxu0 %v76
    %1521 = vmatprep.subr.mxu0 0.0
    %1522 = vmatpush1.msra.mxu0 %v77
    %1523 = vmatprep.subr.mxu0 0.0
    %1524 = vmatpush1.msra.mxu0 %v78
    %1525 = vmatprep.subr.mxu0 0.0
    %1526 = vmatpush1.msra.mxu0 %v79
    %1527 = vmatprep.subr.mxu0 0.0
    %1528 = vmatpush1.msra.mxu0 %v80
    %1529 = vmatprep.subr.mxu0 0.0
    %1530 = vmatpush1.msra.mxu0 %v81
    %1531 = vmatprep.subr.mxu0 0.0
    %1532 = vmatpush1.msra.mxu0 %v82
    %1533 = vmatprep.subr.mxu0 0.0
    %1534 = vmatpush1.msra.mxu0 %v83
    %1535 = vmatprep.subr.mxu0 0.0
    %1536 = vmatpush1.msra.mxu0 %v84
    %1537 = vmatprep.subr.mxu0 0.0
    %1538 = vmatpush1.msra.mxu0 0.0
    %1539 = vmatprep.subr.mxu0 0.0
    %1540 = vmatpush1.msra.mxu0 0.0
    %1541 = vmatprep.subr.mxu0 0.0
    %1542 = vmatpush1.msra.mxu0 0.0
    %1543 = vmatprep.subr.mxu0 0.0
    %1544 = vmatpush1.msra.mxu0 0.0
    %1545 = vmatprep.subr.mxu0 0.0
    %1546 = vmatpush1.msra.mxu0 0.0
    %1547 = vmatprep.subr.mxu0 0.0
    %1548 = vmatpush1.msra.mxu0 0.0
    %1549 = vmatprep.subr.mxu0 0.0
    %1550 = vmatpush1.msra.mxu0 0.0
    %1551 = vmatprep.subr.mxu0 0.0
    %1552 = vmatpush1.msra.mxu0 0.0
    %1553 = vmatprep.subr.mxu0 0.0
    %1554 = vmatpush1.msra.mxu0 0.0
    %1555 = vmatprep.subr.mxu0 0.0
    %1556 = vmatpush1.msra.mxu0 0.0
    %1557 = vmatprep.subr.mxu0 0.0
    %1558 = vmatpush1.msra.mxu0 0.0
    %1559 = vmatprep.subr.mxu0 0.0
    %1560 = vmatpush1.msra.mxu0 0.0
    %1561 = vmatprep.subr.mxu0 0.0
    %1562 = vmatpush1.msra.mxu0 0.0
    %1563 = vmatprep.subr.mxu0 0.0
    %1564 = vmatpush1.msra.mxu0 0.0
    %1565 = vmatprep.subr.mxu0 0.0
    %1566 = vmatpush1.msra.mxu0 0.0
    %1567 = vmatprep.subr.mxu0 0.0
    %1568 = vmatpush1.msra.mxu0 0.0
    %1569 = vmatprep.mubr.f32.mxu0 0.0
    %1570 = vmatmul.mubr.f32.gmra.mrb[0].mxu0 %v1504
    %v1571 = vpop.f32.mrb[0].mxu0
    %v1572 = vadd.f32 0.0, %v1571
    %v1573 = vpop.f32.mrb[0].mxu0
    %1574 = vdwg.mxu0
    %v1575 = vadd.f32 %v1422, %v1572
    %v1576 = vsel %vm624, %v1575, 0.0
    %1577 = vadd.xlane.f32.xlu0 %v1576
    %v1578 = vpop.xlane.xlu0 %1577
    %v1579 = vmul.f32 %v1578, %v628
    %v1580 = vsub.f32 %v1575, %v1579
    %v1581 = vmul.f32 %v1580, %v1580
    %v1582 = vsel %vm624, %v1581, 0.0
    %1583 = vadd.xlane.f32.xlu0 %v1582
    %v1584 = vpop.xlane.xlu0 %1583
    %v1585 = vmul.f32 %v1584, %v628
    %v1586 = vadd.f32 %v1585, 1e-12
    %v1587 = vrsqrt.pop %v1586
    %v1588 = vmul.f32 %v1580, %v1587
    %v1589 = vmul.f32 %v1588, %v36
    %v1590 = vadd.f32 %v1589, %v37
    %v1592 = vsel %vm171, %v1590, 0
    %1594 = vmatprep.subr.mxu0 0.0
    %1595 = vmatpush1.msra.mxu0 %v60
    %1596 = vmatprep.subr.mxu0 0.0
    %1597 = vmatpush1.msra.mxu0 %v61
    %1598 = vmatprep.subr.mxu0 0.0
    %1599 = vmatpush1.msra.mxu0 %v62
    %1600 = vmatprep.subr.mxu0 0.0
    %1601 = vmatpush1.msra.mxu0 %v63
    %1602 = vmatprep.subr.mxu0 0.0
    %1603 = vmatpush1.msra.mxu0 0.0
    %1604 = vmatprep.subr.mxu0 0.0
    %1605 = vmatpush1.msra.mxu0 0.0
    %1606 = vmatprep.subr.mxu0 0.0
    %1607 = vmatpush1.msra.mxu0 0.0
    %1608 = vmatprep.subr.mxu0 0.0
    %1609 = vmatpush1.msra.mxu0 0.0
    %1610 = vmatprep.subr.mxu0 0.0
    %1611 = vmatpush1.msra.mxu0 0.0
    %1612 = vmatprep.subr.mxu0 0.0
    %1613 = vmatpush1.msra.mxu0 0.0
    %1614 = vmatprep.subr.mxu0 0.0
    %1615 = vmatpush1.msra.mxu0 0.0
    %1616 = vmatprep.subr.mxu0 0.0
    %1617 = vmatpush1.msra.mxu0 0.0
    %1618 = vmatprep.subr.mxu0 0.0
    %1619 = vmatpush1.msra.mxu0 0.0
    %1620 = vmatprep.subr.mxu0 0.0
    %1621 = vmatpush1.msra.mxu0 0.0
    %1622 = vmatprep.subr.mxu0 0.0
    %1623 = vmatpush1.msra.mxu0 0.0
    %1624 = vmatprep.subr.mxu0 0.0
    %1625 = vmatpush1.msra.mxu0 0.0
    %1626 = vmatprep.subr.mxu0 0.0
    %1627 = vmatpush1.msra.mxu0 0.0
    %1628 = vmatprep.subr.mxu0 0.0
    %1629 = vmatpush1.msra.mxu0 0.0
    %1630 = vmatprep.subr.mxu0 0.0
    %1631 = vmatpush1.msra.mxu0 0.0
    %1632 = vmatprep.subr.mxu0 0.0
    %1633 = vmatpush1.msra.mxu0 0.0
    %1634 = vmatprep.subr.mxu0 0.0
    %1635 = vmatpush1.msra.mxu0 0.0
    %1636 = vmatprep.subr.mxu0 0.0
    %1637 = vmatpush1.msra.mxu0 0.0
    %1638 = vmatprep.subr.mxu0 0.0
    %1639 = vmatpush1.msra.mxu0 0.0
    %1640 = vmatprep.subr.mxu0 0.0
    %1641 = vmatpush1.msra.mxu0 0.0
    %1642 = vmatprep.subr.mxu0 0.0
    %1643 = vmatpush1.msra.mxu0 0.0
    %1644 = vmatprep.subr.mxu0 0.0
    %1645 = vmatpush1.msra.mxu0 0.0
    %1646 = vmatprep.subr.mxu0 0.0
    %1647 = vmatpush1.msra.mxu0 0.0
    %1648 = vmatprep.subr.mxu0 0.0
    %1649 = vmatpush1.msra.mxu0 0.0
    %1650 = vmatprep.subr.mxu0 0.0
    %1651 = vmatpush1.msra.mxu0 0.0
    %1652 = vmatprep.subr.mxu0 0.0
    %1653 = vmatpush1.msra.mxu0 0.0
    %1654 = vmatprep.subr.mxu0 0.0
    %1655 = vmatpush1.msra.mxu0 0.0
    %1656 = vmatprep.subr.mxu0 0.0
    %1657 = vmatpush1.msra.mxu0 0.0
    %1658 = vmatprep.mubr.f32.mxu0 0.0
    %1659 = vmatmul.mubr.f32.gmra.mrb[0].mxu0 %v1592
    %v1660 = vpop.f32.mrb[0].mxu0
    %v1661 = vadd.f32 %v38, %v1660
    %v1662 = vpop.f32.mrb[0].mxu0
    %1663 = vdwg.mxu0
    %v1664 = vtanh.pop %v1661
    %v1666 = vrot.slane %v1664, 7
    %v1668 = vsel %vm151, %v882, %v1666
    %vm1669 = vcmask 254976
    %1670 = vst.msk [vmem:[#allocation4] sm:$0x3] %vm1669, %v1668
    // Predicated region
    $region30: #{big_model_forward.1} parent=1 // pred_check
      _
    $region31: #{big_model_forward.1} parent=1 // pred_check_branch
      %1672 = sbr.rel (0) target = $region33
    $region32: #{big_model_forward.1} parent=1 // pred_region
      %s1674 = ssub.s32 32, 32
      %1675 = vsyncadd [#allocation5], %s1674
      %s1677 = sshll.u32 [#allocation4], 4
      %s1678 = int_to_ptr.vmem [resolvable:$true] %s1677
      %1680 = dma.vmem_to_hbm [thread:$0]  %s1678, 32, %s8, [#allocation5]
    $region33: #{big_model_forward.1} parent=1 // pred_fallthru
      _
    // Predicated region
    $region34: #{big_model_forward.1} parent=1 // pred_check
      _
    $region35: #{big_model_forward.1} parent=1 // pred_check_branch
      %1682 = sbr.rel (0) target = $region37
    $region36: #{big_model_forward.1} parent=1 // pred_region
      %1683 = dma.done [#allocation5], 32
    $region37: #{big_model_forward.1} parent=1 // pred_fallthru
      _
    %1684 = vsyncpa [#allocation5], 1

</llo_original>
